<compile_context>
chip_gen: v6e
topology: v6e:2x2x1
jax: 0.10.0
libtpu: 0.0.40
codegen_flags: <defaults>
</compile_context>

<pallas_src>
import jax
import jax.numpy as jnp
from jax import lax
from jax.experimental import pallas as pl
from jax.experimental.pallas import tpu as pltpu


_VMEM_LIMIT_BYTES = 32 * 1024 * 1024  # <= default scoped VMEM on v6e/v7x, raises v5e


# ----------------------------------------------------------------------------
# helpers
# ----------------------------------------------------------------------------
def _round_up(x, m):
    return pl.cdiv(x, m) * m


def _pick_batch_tile(B, cap):
    """Pick a batch tile (multiple of 8) and grid size.

    Returns (tb, num_tiles, B_pad) with tb * num_tiles == B_pad >= B, so awkward
    B is handled by padding + masking (never by a pathological tb = B tile).
    When B >= 16 the grid has >= 2 steps so the "parallel" axis can be split
    across both TensorCores on v7x.
    """
    tb = min(B, cap)
    if B >= 16:
        tb = min(tb, pl.cdiv(B, 2))
    tb = max(8, _round_up(tb, 8))
    num_tiles = pl.cdiv(B, tb)
    return tb, num_tiles, num_tiles * tb


def _softplus(x):
    # softplus(x) = max(x, 0) + log(1 + exp(-|x|))   -- stable for all x
    return jnp.maximum(x, 0.0) + jnp.log(1.0 + jnp.exp(-jnp.abs(x)))


def _stable_sigmoid(x):
    # exp on the EUP, reciprocal kept on the EUP slot (approx vrcp ~ free).
    z = jnp.exp(-jnp.abs(x))
    inv = pl.reciprocal(1.0 + z, approx=True)
    return jnp.where(x >= 0.0, inv, z * inv)


# ----------------------------------------------------------------------------
# Training path:
#   loss = -( sum(log sigmoid(<u,i>)) + sum(log(1 - sigmoid(<u,j>))) )
#        =  sum( softplus(-<u,i>) + softplus(<u,j>) )
# Gathers fused: one-hot(idx) @ table on the MXU, per batch tile.
# ----------------------------------------------------------------------------
def bce_loss(u_idx, i_idx, j_idx, user_table, item_table, *, tile_cap=8192):
    B = u_idx.shape[0]
    NU, D = user_table.shape
    NI, _ = item_table.shape

    # Keep the (tb, NU)/(tb, NI) one-hot intermediates within a few MiB.
    cap = min(tile_cap, max(8, (4 << 20) // (4 * max(NU, NI))))
    tb, num_tiles, B_pad = _pick_batch_tile(B, cap)

    def pad_idx(idx):
        idx = idx.astype(jnp.int32).reshape(B, 1)
        if B_pad != B:
            idx = jnp.pad(idx, ((0, B_pad - B), (0, 0)))  # pad rows masked in-kernel
        return idx

    u2, i2, j2 = pad_idx(u_idx), pad_idx(i_idx), pad_idx(j_idx)

    def kernel(uidx_ref, iidx_ref, jidx_ref, utbl_ref, itbl_ref, out_ref):
        f32 = jnp.float32

        def gather(idx_ref, tbl_ref, nrows):
            # Fused embedding gather: one-hot(idx) @ table (MXU). Exact row select.
            idx = idx_ref[...]                                             # (tb, 1) i32
            oh = (idx == lax.broadcasted_iota(jnp.int32, (tb, nrows), 1)).astype(f32)
            return jnp.dot(oh, tbl_ref[...], preferred_element_type=f32,
                           precision=lax.Precision.HIGHEST)                # (tb, D)

        u = gather(uidx_ref, utbl_ref, NU)
        iv = gather(iidx_ref, itbl_ref, NI)
        jv = gather(jidx_ref, itbl_ref, NI)

        pred_i = jnp.sum(u * iv, axis=-1, keepdims=True)                   # (tb, 1)
        pred_j = jnp.sum(u * jv, axis=-1, keepdims=True)                   # (tb, 1)

        row_loss = _softplus(-pred_i) + _softplus(pred_j)                  # (tb, 1)

        # Mask rows added by batch padding (B is a trace-time constant).
        row = pl.program_id(0) * tb + lax.broadcasted_iota(jnp.int32, (tb, 1), 0)
        row_loss = jnp.where(row < B, row_loss, 0.0)

        # Lane-dense per-tile partial; tiny final sum over tiles happens in JAX,
        # keeping the grid axis "parallel" (v7x megacore friendly).
        partial = jnp.sum(row_loss)
        out_ref[...] = jnp.broadcast_to(partial, out_ref.shape)

    partials = pl.pallas_call(
        kernel,
        out_shape=jax.ShapeDtypeStruct((num_tiles, 1, 128), jnp.float32),
        grid_spec=pltpu.PrefetchScalarGridSpec(
            num_scalar_prefetch=0,
            grid=(num_tiles,),
            in_specs=[
                pl.BlockSpec((tb, 1), lambda t: (t, 0)),
                pl.BlockSpec((tb, 1), lambda t: (t, 0)),
                pl.BlockSpec((tb, 1), lambda t: (t, 0)),
                # Tables: constant block index -> DMA'd once, resident in VMEM.
                pl.BlockSpec((NU, D), lambda t: (0, 0)),
                pl.BlockSpec((NI, D), lambda t: (0, 0)),
            ],
            out_specs=pl.BlockSpec((1, 1, 128), lambda t: (t, 0, 0)),
        ),
        compiler_params=pltpu.CompilerParams(
            dimension_semantics=("parallel",),
            vmem_limit_bytes=_VMEM_LIMIT_BYTES),
    )(u2, i2, j2, user_table, item_table)

    return jnp.sum(partials[:, 0, 0])


# ----------------------------------------------------------------------------
# Test path:  sigmoid( bmm(u.unsqueeze(1), i.permute(0,2,1)) )  -> (B, 1, N)
# Implemented as: score ALL items once via (tb, D) @ (D, tn) MXU matmuls with
# the item axis on lanes, then select the N candidate columns per row.
# ----------------------------------------------------------------------------
def bce_test_scores(u_idx, i_idx, user_table, item_table,
                    *, batch_cap=256, item_tile_cap=2048):
    B = u_idx.shape[0]
    N = i_idx.shape[1]
    NU, D = user_table.shape
    NI, _ = item_table.shape

    cap_b = min(batch_cap, max(8, (2 << 20) // (4 * NU)))
    tb, num_b_tiles, B_pad = _pick_batch_tile(B, cap_b)

    # Item axis on lanes, padded to a multiple of the item tile (multiple of 128)
    # so every load and the (tb, tn) output store is lane-dense (unmasked vst).
    tn = min(item_tile_cap, _round_up(NI, 128))
    NI_pad = _round_up(NI, tn)
    num_n_tiles = NI_pad // tn

    item_t = jnp.transpose(item_table)                    # (D, NI)
    if NI_pad != NI:
        item_t = jnp.pad(item_t, ((0, 0), (0, NI_pad - NI)))

    uid = u_idx.astype(jnp.int32).reshape(B, 1)
    if B_pad != B:
        uid = jnp.pad(uid, ((0, B_pad - B), (0, 0)))      # padded rows sliced off later

    def kernel(uidx_ref, utbl_ref, itbl_t_ref, out_ref):
        f32 = jnp.float32
        idx = uidx_ref[...]                                                # (tb, 1)
        oh = (idx == lax.broadcasted_iota(jnp.int32, (tb, NU), 1)).astype(f32)
        u = jnp.dot(oh, utbl_ref[...], preferred_element_type=f32,
                    precision=lax.Precision.HIGHEST)                       # (tb, D)
        scores = jnp.dot(u, itbl_t_ref[...], preferred_element_type=f32,
                         precision=lax.Precision.HIGHEST)                  # (tb, tn)
        out_ref[...] = _stable_sigmoid(scores)                             # lane-dense

    all_scores = pl.pallas_call(
        kernel,
        out_shape=jax.ShapeDtypeStruct((B_pad, NI_pad), jnp.float32),
        grid_spec=pltpu.PrefetchScalarGridSpec(
            num_scalar_prefetch=0,
            grid=(num_b_tiles, num_n_tiles),
            in_specs=[
                pl.BlockSpec((tb, 1), lambda b, n: (b, 0)),
                pl.BlockSpec((NU, D), lambda b, n: (0, 0)),     # user table resident
                pl.BlockSpec((D, tn), lambda b, n: (0, n)),     # item tile, items on lanes
            ],
            out_specs=pl.BlockSpec((tb, tn), lambda b, n: (b, n)),
        ),
        compiler_params=pltpu.CompilerParams(
            dimension_semantics=("parallel", "parallel"),
            vmem_limit_bytes=_VMEM_LIMIT_BYTES),
    )(uid, user_table, item_t)

    # Select the per-row candidate columns (tiny (B, NI) -> (B, N) gather).
    cand = jnp.take_along_axis(all_scores[:B, :NI], i_idx.astype(jnp.int32), axis=1)
    return cand.reshape(B, 1, N)


# ----------------------------------------------------------------------------
# Parameter init (xavier_uniform on [num_rows, embed_dim]) + forward wrapper
# ----------------------------------------------------------------------------
def xavier_uniform(key, shape):
    fan_in, fan_out = shape[0], shape[1]
    bound = jnp.sqrt(6.0 / (fan_in + fan_out))
    return jax.random.uniform(key, shape, jnp.float32, -bound, bound)


def bce_model_forward(params, u_idx, i_idx, j_idx=None, test=False):
    user_table = params["user_embed"]
    item_table = params["item_embed"]
    if test:
        return bce_test_scores(u_idx, i_idx, user_table, item_table)
    return bce_loss(u_idx, i_idx, j_idx, user_table, item_table)


if __name__ == "__main__":
    num_user, num_item, embed_dim = 32, 64, 32
    B, N = 16, 16

    key = jax.random.PRNGKey(0)
    k_u, k_i, k1, k2, k3, k4 = jax.random.split(key, 6)
    params = {
        "user_embed": xavier_uniform(k_u, (num_user, embed_dim)),
        "item_embed": xavier_uniform(k_i, (num_item, embed_dim)),
    }

    u_idx = jax.random.randint(k1, (B,), 0, num_user)
    i_idx = jax.random.randint(k2, (B,), 0, num_item)
    j_idx = jax.random.randint(k3, (B,), 0, num_item)
    i_idx_test = jax.random.randint(k4, (B, N), 0, num_item)

    # --- training path (scalar loss) ---
    loss = jax.block_until_ready(bce_model_forward(params, u_idx, i_idx, j_idx))

    # pure-JAX reference (same math as the PyTorch module)
    ue = jnp.take(params["user_embed"], u_idx, axis=0)
    ie = jnp.take(params["item_embed"], i_idx, axis=0)
    je = jnp.take(params["item_embed"], j_idx, axis=0)
    pi = jnp.sum(ue * ie, -1)
    pj = jnp.sum(ue * je, -1)
    ref_loss = -(jnp.sum(jnp.log(jax.nn.sigmoid(pi)))
                 + jnp.sum(jnp.log(1.0 - jax.nn.sigmoid(pj))))
    # Tolerance accounts for MXU f32 matmul rounding in the fused gathers.
    assert jnp.allclose(loss, ref_loss, rtol=2e-3, atol=2e-3), (loss, ref_loss)

    # --- test path (sigmoid scores, shape (B, 1, N)) ---
    scores = jax.block_until_ready(
        bce_model_forward(params, u_idx, i_idx_test, test=True))
    ie_t = jnp.take(params["item_embed"], i_idx_test, axis=0)              # (B, N, D)
    ref_scores = jax.nn.sigmoid(jnp.einsum("bd,bnd->bn", ue, ie_t))[:, None, :]
    assert scores.shape == (B, 1, N)
    # Tolerance accounts for approx EUP reciprocal + MXU rounding.
    assert jnp.allclose(scores, ref_scores, rtol=2e-3, atol=2e-3), (
        float(jnp.max(jnp.abs(scores - ref_scores))))

    print("KERNEL_OK")
</pallas_src>

<mosaic_0001>
module attributes {stable_mosaic.version = 11 : i64} {
  func.func @kernel(%arg0: i32, %arg1: memref<8x1xi32, #tpu.memory_space<vmem>>, %arg2: memref<8x1xi32, #tpu.memory_space<vmem>>, %arg3: memref<8x1xi32, #tpu.memory_space<vmem>>, %arg4: memref<32x32xf32, #tpu.memory_space<vmem>>, %arg5: memref<64x32xf32, #tpu.memory_space<vmem>>, %arg6: memref<1x1x128xf32, #tpu.memory_space<vmem>>) attributes {dimension_semantics = [#tpu.dimension_semantics<parallel>], iteration_bounds = array<i64: 2>, scalar_prefetch = 0 : i64, scratch_operands = 0 : i64, tpu.core_type = #tpu.core_type<tc>, window_params = [{transform_indices = @transform_0, window_bounds = array<i64: 8, 1>}, {transform_indices = @transform_1, window_bounds = array<i64: 8, 1>}, {transform_indices = @transform_2, window_bounds = array<i64: 8, 1>}, {pipeline_mode = #tpu.pipeline_mode<synchronous>, transform_indices = @transform_3, window_bounds = array<i64: 32, 32>}, {pipeline_mode = #tpu.pipeline_mode<synchronous>, transform_indices = @transform_4, window_bounds = array<i64: 64, 32>}, {transform_indices = @transform_5, window_bounds = array<i64: 1, 1, 128>}]} {
    %c0 = arith.constant 0 : index
    %c0_0 = arith.constant 0 : index
    %0 = vector.load %arg1[%c0, %c0_0] : memref<8x1xi32, #tpu.memory_space<vmem>>, vector<8x1xi32>
    %1 = tpu.iota {dimensions = array<i32: 1>} : vector<8x32xi32>
    %2 = vector.broadcast %0 : vector<8x1xi32> to vector<8x32xi32>
    %3 = arith.cmpi eq, %2, %1 : vector<8x32xi32>
    %4 = arith.extui %3 : vector<8x32xi1> to vector<8x32xi32>
    %5 = arith.sitofp %4 : vector<8x32xi32> to vector<8x32xf32>
    %c0_1 = arith.constant 0 : index
    %c0_2 = arith.constant 0 : index
    %6 = vector.load %arg4[%c0_1, %c0_2] : memref<32x32xf32, #tpu.memory_space<vmem>>, vector<32x32xf32>
    %cst = arith.constant dense<0.000000e+00> : vector<8x32xf32>
    %7 = tpu.matmul %5, %6, %cst {dimension_numbers = #tpu.dot_dimension_numbers<[1], [0], [0], [1], [0, 0, 1, 1], [], []>, precision = #tpu.contract_precision<fp32>} : vector<8x32xf32>, vector<32x32xf32>, vector<8x32xf32> -> vector<8x32xf32>
    %c0_3 = arith.constant 0 : index
    %c0_4 = arith.constant 0 : index
    %8 = vector.load %arg2[%c0_3, %c0_4] : memref<8x1xi32, #tpu.memory_space<vmem>>, vector<8x1xi32>
    %9 = tpu.iota {dimensions = array<i32: 1>} : vector<8x64xi32>
    %10 = vector.broadcast %8 : vector<8x1xi32> to vector<8x64xi32>
    %11 = arith.cmpi eq, %10, %9 : vector<8x64xi32>
    %12 = arith.extui %11 : vector<8x64xi1> to vector<8x64xi32>
    %13 = arith.sitofp %12 : vector<8x64xi32> to vector<8x64xf32>
    %c0_5 = arith.constant 0 : index
    %c0_6 = arith.constant 0 : index
    %14 = vector.load %arg5[%c0_5, %c0_6] : memref<64x32xf32, #tpu.memory_space<vmem>>, vector<64x32xf32>
    %cst_7 = arith.constant dense<0.000000e+00> : vector<8x32xf32>
    %15 = tpu.matmul %13, %14, %cst_7 {dimension_numbers = #tpu.dot_dimension_numbers<[1], [0], [0], [1], [0, 0, 1, 1], [], []>, precision = #tpu.contract_precision<fp32>} : vector<8x64xf32>, vector<64x32xf32>, vector<8x32xf32> -> vector<8x32xf32>
    %c0_8 = arith.constant 0 : index
    %c0_9 = arith.constant 0 : index
    %16 = vector.load %arg3[%c0_8, %c0_9] : memref<8x1xi32, #tpu.memory_space<vmem>>, vector<8x1xi32>
    %17 = tpu.iota {dimensions = array<i32: 1>} : vector<8x64xi32>
    %18 = vector.broadcast %16 : vector<8x1xi32> to vector<8x64xi32>
    %19 = arith.cmpi eq, %18, %17 : vector<8x64xi32>
    %20 = arith.extui %19 : vector<8x64xi1> to vector<8x64xi32>
    %21 = arith.sitofp %20 : vector<8x64xi32> to vector<8x64xf32>
    %c0_10 = arith.constant 0 : index
    %c0_11 = arith.constant 0 : index
    %22 = vector.load %arg5[%c0_10, %c0_11] : memref<64x32xf32, #tpu.memory_space<vmem>>, vector<64x32xf32>
    %cst_12 = arith.constant dense<0.000000e+00> : vector<8x32xf32>
    %23 = tpu.matmul %21, %22, %cst_12 {dimension_numbers = #tpu.dot_dimension_numbers<[1], [0], [0], [1], [0, 0, 1, 1], [], []>, precision = #tpu.contract_precision<fp32>} : vector<8x64xf32>, vector<64x32xf32>, vector<8x32xf32> -> vector<8x32xf32>
    %24 = arith.mulf %7, %15 : vector<8x32xf32>
    %cst_13 = arith.constant dense<0.000000e+00> : vector<8xf32>
    %25 = vector.multi_reduction <add>, %24, %cst_13 [1] : vector<8x32xf32> to vector<8xf32>
    %26 = vector.shape_cast %25 : vector<8xf32> to vector<8x1xf32>
    %27 = arith.mulf %7, %23 : vector<8x32xf32>
    %cst_14 = arith.constant dense<0.000000e+00> : vector<8xf32>
    %28 = vector.multi_reduction <add>, %27, %cst_14 [1] : vector<8x32xf32> to vector<8xf32>
    %29 = vector.shape_cast %28 : vector<8xf32> to vector<8x1xf32>
    %cst_15 = arith.constant 0.000000e+00 : f32
    %30 = vector.broadcast %cst_15 : f32 to vector<8x1xf32>
    %31 = arith.subf %30, %26 : vector<8x1xf32>
    %cst_16 = arith.constant 0.000000e+00 : f32
    %32 = vector.broadcast %cst_16 : f32 to vector<8x1xf32>
    %33 = arith.maximumf %31, %32 : vector<8x1xf32>
    %34 = math.absf %31 : vector<8x1xf32>
    %cst_17 = arith.constant 0.000000e+00 : f32
    %35 = vector.broadcast %cst_17 : f32 to vector<8x1xf32>
    %36 = arith.subf %35, %34 : vector<8x1xf32>
    %37 = math.exp %36 : vector<8x1xf32>
    %cst_18 = arith.constant 1.000000e+00 : f32
    %38 = vector.broadcast %cst_18 : f32 to vector<8x1xf32>
    %39 = arith.addf %38, %37 : vector<8x1xf32>
    %40 = math.log %39 : vector<8x1xf32>
    %41 = arith.addf %33, %40 : vector<8x1xf32>
    %cst_19 = arith.constant 0.000000e+00 : f32
    %42 = vector.broadcast %cst_19 : f32 to vector<8x1xf32>
    %43 = arith.maximumf %29, %42 : vector<8x1xf32>
    %44 = math.absf %29 : vector<8x1xf32>
    %cst_20 = arith.constant 0.000000e+00 : f32
    %45 = vector.broadcast %cst_20 : f32 to vector<8x1xf32>
    %46 = arith.subf %45, %44 : vector<8x1xf32>
    %47 = math.exp %46 : vector<8x1xf32>
    %cst_21 = arith.constant 1.000000e+00 : f32
    %48 = vector.broadcast %cst_21 : f32 to vector<8x1xf32>
    %49 = arith.addf %48, %47 : vector<8x1xf32>
    %50 = math.log %49 : vector<8x1xf32>
    %51 = arith.addf %43, %50 : vector<8x1xf32>
    %52 = arith.addf %41, %51 : vector<8x1xf32>
    %c8_i32 = arith.constant 8 : i32
    %53 = arith.muli %arg0, %c8_i32 : i32
    %54 = tpu.iota {dimensions = array<i32: 0>} : vector<8x1xi32>
    %55 = vector.broadcast %53 : i32 to vector<8x1xi32>
    %56 = arith.addi %55, %54 : vector<8x1xi32>
    %c16_i32 = arith.constant 16 : i32
    %57 = vector.broadcast %c16_i32 : i32 to vector<8x1xi32>
    %58 = arith.cmpi slt, %56, %57 : vector<8x1xi32>
    %cst_22 = arith.constant 0.000000e+00 : f32
    %59 = vector.broadcast %cst_22 : f32 to vector<8x1xf32>
    %60 = arith.select %58, %52, %59 : vector<8x1xi1>, vector<8x1xf32>
    %61 = vector.shape_cast %60 : vector<8x1xf32> to vector<1x8x1xf32>
    %cst_23 = arith.constant dense<0.000000e+00> : vector<1xf32>
    %62 = vector.multi_reduction <add>, %61, %cst_23 [1, 2] : vector<1x8x1xf32> to vector<1xf32>
    %63 = vector.shape_cast %62 : vector<1xf32> to vector<1x1x1xf32>
    %64 = vector.extract %63[0, 0, 0] : f32 from vector<1x1x1xf32>
    %65 = vector.broadcast %64 : f32 to vector<1x1x128xf32>
    %c0_24 = arith.constant 0 : index
    %c0_25 = arith.constant 0 : index
    %c0_26 = arith.constant 0 : index
    %66 = vector.load %arg6[%c0_24, %c0_25, %c0_26] : memref<1x1x128xf32, #tpu.memory_space<vmem>>, vector<1x1x128xf32>
    tpu.vector_store %arg6[%c0_24, %c0_25, %c0_26], %65 {strides = array<i32>} : memref<1x1x128xf32, #tpu.memory_space<vmem>>, vector<1x1x128xf32>,
    return
  }
  func.func @transform_0(%arg0: i32) -> (i32, i32) {
    %c0_i32 = arith.constant 0 : i32
    %c0_i32_0 = arith.constant 0 : i32
    return %arg0, %c0_i32 : i32, i32
  }
  func.func @transform_1(%arg0: i32) -> (i32, i32) {
    %c0_i32 = arith.constant 0 : i32
    %c0_i32_0 = arith.constant 0 : i32
    return %arg0, %c0_i32 : i32, i32
  }
  func.func @transform_2(%arg0: i32) -> (i32, i32) {
    %c0_i32 = arith.constant 0 : i32
    %c0_i32_0 = arith.constant 0 : i32
    return %arg0, %c0_i32 : i32, i32
  }
  func.func @transform_3(%arg0: i32) -> (i32, i32) {
    %c0_i32 = arith.constant 0 : i32
    %c0_i32_0 = arith.constant 0 : i32
    %c0_i32_1 = arith.constant 0 : i32
    return %c0_i32, %c0_i32_0 : i32, i32
  }
  func.func @transform_4(%arg0: i32) -> (i32, i32) {
    %c0_i32 = arith.constant 0 : i32
    %c0_i32_0 = arith.constant 0 : i32
    %c0_i32_1 = arith.constant 0 : i32
    return %c0_i32, %c0_i32_0 : i32, i32
  }
  func.func @transform_5(%arg0: i32) -> (i32, i32, i32) {
    %c0_i32 = arith.constant 0 : i32
    %c0_i32_0 = arith.constant 0 : i32
    %c0_i32_1 = arith.constant 0 : i32
    return %arg0, %c0_i32, %c0_i32_0 : i32, i32, i32
  }
}

</mosaic_0001>

<llo_original>
// kernel: tpu_custom_call.1
$region0: #{tpu_custom_call.1}
  #allocation0 [shape = 'u32[]', space=smem, size = 0x4, offset = 0x4, fixed_abs, tag = 'smem constant byte address 0x4 - core index']
  #allocation1 [shape = 'u32[144,128]{1,0:T(1,128)}', space=vmem, size = 0x12000, scoped, tag = 'internal scratch']
  %s0 = inlined_call_operand.vmem [shape: s32[16,1], index: 0, kind: input, shape index: {}]
  %s1 = inlined_call_operand.vmem [shape: s32[16,1], index: 1, kind: input, shape index: {}]
  %s2 = inlined_call_operand.vmem [shape: s32[16,1], index: 2, kind: input, shape index: {}]
  %s3 = inlined_call_operand.vmem [shape: f32[32,32], index: 3, kind: input, shape index: {}]
  %s4 = inlined_call_operand.vmem [shape: f32[64,32], index: 4, kind: input, shape index: {}]
  %s5 = inlined_call_operand.hbm [shape: f32[2,1,128], index: 5, kind: output, shape index: {}]
  %s6 = sld [smem:[#allocation0]]
  $region53: #{tpu_custom_call.1} parent=0
    _
  %s8 = ssub.s32 1, %s6
  %s9 = scalar_select 0, %s8, %s6
  $region1: #{tpu_custom_call.1} parent=0
    #allocation2 [shape = 'u8[1024]{0}', space=vmem, size = 0x400, scoped, tag = 'output window, operand 0']
    #allocation3 [shape = 's32[2]{0}', space=sflag, size = 0x8, scoped, tag = 'scoped memory for tpu_custom_call.1']
    %10 = vsyncpa [#allocation3], 0
    %s11 = scalar_lea.sflag [#allocation3], 1
    %12 = vsyncpa %s11, 0
    loop: start=0, step=1, limit=4
    $region2: #{tpu_custom_call.1} parent=1 // loop_pre_header
      _
    $region3: #{tpu_custom_call.1} parent=1 // loop_header
      %s14 = sphi 0, %s18
      %p15 = scmp.ge.s32.totalorder %s14, 4
      %s24 = sphi 0, %s26
      %s27 = sphi 0, %s24
      %s28 = sphi 0, %s27
      %s44 = sphi 0, %s28
      %s50 = sphi 0, %s52
      %s53 = sphi 0, %s50
      %s54 = sphi 0, %s53
      %s70 = sphi 0, %s54
      %s76 = sphi 0, %s78
      %s79 = sphi 0, %s76
      %s80 = sphi 0, %s79
      %s96 = sphi 0, %s80
      %s100 = sphi 0, %s100
      %s102 = sphi 0, %s100
      %s103 = sphi 0, %s102
      %s117 = sphi 0, %s103
      %s121 = sphi 0, %s121
      %s123 = sphi 0, %s121
      %s124 = sphi 0, %s123
      %s138 = sphi 0, %s124
      %s144 = sphi 0, %s146
      %s147 = sphi 0, %s144
      %s148 = sphi 0, %s147
      %s164 = sphi 0, %s148
    $region4: #{tpu_custom_call.1} parent=1 // loop_header_branch
      %17 = sbr.rel (%p15) target = $region8
    $region5: #{tpu_custom_call.1} parent=1 // loop_body
      %s19 = ssub.s32 %s14, 1
      %s20 = ssub.s32 %s14, 2
      %s21 = sadd.s32 %s14, 1
      %s22 = ssub.s32 %s14, %s21
      %p23 = scmp.eq.s32.totalorder %s22, 0
      %s25 = sadd.s32 %s24, 1
      %s26 = scalar_select %p23, %s24, %s25
      %p29 = pneg %p23
      %p30 = scmp.eq.s32.totalorder %s14, 1
      %p31 = por %p29, %p30
      %p32 = scmp.ne.s32.totalorder %s24, %s27
      %p33 = scmp.eq.s32.totalorder %s14, 0
      %p34 = por %p32, %p33
      %p35 = scmp.ne.s32.totalorder %s24, %s27
      %p36 = scmp.eq.s32.totalorder %s19, 1
      %p37 = por %p35, %p36
      %p38 = scmp.ne.s32.totalorder %s27, %s28
      %p39 = scmp.eq.s32.totalorder %s19, 0
      %p40 = por %p38, %p39
      %p41 = scmp.ne.s32.totalorder %s27, %s28
      %p42 = scmp.eq.s32.totalorder %s20, 1
      %p43 = por %p41, %p42
      %p45 = scmp.ne.s32.totalorder %s28, %s44
      %p46 = scmp.eq.s32.totalorder %s20, 0
      %p47 = por %p45, %p46
      %s48 = ssub.s32 %s14, %s21
      %p49 = scmp.eq.s32.totalorder %s48, 0
      %s51 = sadd.s32 %s50, 1
      %s52 = scalar_select %p49, %s50, %s51
      %p55 = pneg %p49
      %p56 = scmp.eq.s32.totalorder %s14, 1
      %p57 = por %p55, %p56
      %p58 = scmp.ne.s32.totalorder %s50, %s53
      %p59 = scmp.eq.s32.totalorder %s14, 0
      %p60 = por %p58, %p59
      %p61 = scmp.ne.s32.totalorder %s50, %s53
      %p62 = scmp.eq.s32.totalorder %s19, 1
      %p63 = por %p61, %p62
      %p64 = scmp.ne.s32.totalorder %s53, %s54
      %p65 = scmp.eq.s32.totalorder %s19, 0
      %p66 = por %p64, %p65
      %p67 = scmp.ne.s32.totalorder %s53, %s54
      %p68 = scmp.eq.s32.totalorder %s20, 1
      %p69 = por %p67, %p68
      %p71 = scmp.ne.s32.totalorder %s54, %s70
      %p72 = scmp.eq.s32.totalorder %s20, 0
      %p73 = por %p71, %p72
      %s74 = ssub.s32 %s14, %s21
      %p75 = scmp.eq.s32.totalorder %s74, 0
      %s77 = sadd.s32 %s76, 1
      %s78 = scalar_select %p75, %s76, %s77
      %p81 = pneg %p75
      %p82 = scmp.eq.s32.totalorder %s14, 1
      %p83 = por %p81, %p82
      %p84 = scmp.ne.s32.totalorder %s76, %s79
      %p85 = scmp.eq.s32.totalorder %s14, 0
      %p86 = por %p84, %p85
      %p87 = scmp.ne.s32.totalorder %s76, %s79
      %p88 = scmp.eq.s32.totalorder %s19, 1
      %p89 = por %p87, %p88
      %p90 = scmp.ne.s32.totalorder %s79, %s80
      %p91 = scmp.eq.s32.totalorder %s19, 0
      %p92 = por %p90, %p91
      %p93 = scmp.ne.s32.totalorder %s79, %s80
      %p94 = scmp.eq.s32.totalorder %s20, 1
      %p95 = por %p93, %p94
      %p97 = scmp.ne.s32.totalorder %s80, %s96
      %p98 = scmp.eq.s32.totalorder %s20, 0
      %p99 = por %p97, %p98
      %s101 = sadd.s32 %s100, 1
      %p104 = scmp.eq.s32.totalorder %s14, 1
      %p105 = scmp.ne.s32.totalorder %s100, %s102
      %p106 = scmp.eq.s32.totalorder %s14, 0
      %p107 = por %p105, %p106
      %p108 = scmp.ne.s32.totalorder %s100, %s102
      %p109 = scmp.eq.s32.totalorder %s19, 1
      %p110 = por %p108, %p109
      %p111 = scmp.ne.s32.totalorder %s102, %s103
      %p112 = scmp.eq.s32.totalorder %s19, 0
      %p113 = por %p111, %p112
      %p114 = scmp.ne.s32.totalorder %s102, %s103
      %p115 = scmp.eq.s32.totalorder %s20, 1
      %p116 = por %p114, %p115
      %p118 = scmp.ne.s32.totalorder %s103, %s117
      %p119 = scmp.eq.s32.totalorder %s20, 0
      %p120 = por %p118, %p119
      %s122 = sadd.s32 %s121, 1
      %p125 = scmp.eq.s32.totalorder %s14, 1
      %p126 = scmp.ne.s32.totalorder %s121, %s123
      %p127 = scmp.eq.s32.totalorder %s14, 0
      %p128 = por %p126, %p127
      %p129 = scmp.ne.s32.totalorder %s121, %s123
      %p130 = scmp.eq.s32.totalorder %s19, 1
      %p131 = por %p129, %p130
      %p132 = scmp.ne.s32.totalorder %s123, %s124
      %p133 = scmp.eq.s32.totalorder %s19, 0
      %p134 = por %p132, %p133
      %p135 = scmp.ne.s32.totalorder %s123, %s124
      %p136 = scmp.eq.s32.totalorder %s20, 1
      %p137 = por %p135, %p136
      %p139 = scmp.ne.s32.totalorder %s124, %s138
      %p140 = scmp.eq.s32.totalorder %s20, 0
      %p141 = por %p139, %p140
      %s142 = ssub.s32 %s14, %s21
      %p143 = scmp.eq.s32.totalorder %s142, 0
      %s145 = sadd.s32 %s144, 1
      %s146 = scalar_select %p143, %s144, %s145
      %p149 = pneg %p143
      %p150 = scmp.eq.s32.totalorder %s14, 1
      %p151 = por %p149, %p150
      %p152 = scmp.ne.s32.totalorder %s144, %s147
      %p153 = scmp.eq.s32.totalorder %s14, 0
      %p154 = por %p152, %p153
      %p155 = scmp.ne.s32.totalorder %s144, %s147
      %p156 = scmp.eq.s32.totalorder %s19, 1
      %p157 = por %p155, %p156
      %p158 = scmp.ne.s32.totalorder %s147, %s148
      %p159 = scmp.eq.s32.totalorder %s19, 0
      %p160 = por %p158, %p159
      %p161 = scmp.ne.s32.totalorder %s147, %s148
      %p162 = scmp.eq.s32.totalorder %s20, 1
      %p163 = por %p161, %p162
      %p165 = scmp.ne.s32.totalorder %s148, %s164
      %p166 = scmp.eq.s32.totalorder %s20, 0
      %p167 = por %p165, %p166
      %p168 = scmp.le.s32.totalorder 1, %s14
      %p169 = scmp.lt.s32.totalorder %s14, 3
      %p170 = pnand %p168, %p169
      %p171 = pneg %p170
      // Predicated region
      $region9: #{tpu_custom_call.1} parent=5 // pred_check
        _
      $region10: #{tpu_custom_call.1} parent=5 // pred_check_branch
        %173 = sbr.rel (%p170) target = $region12
      $region11: #{tpu_custom_call.1} parent=5 // pred_region
        %s174 = ssub.s32 %s14, 1
        // Predicated region
        $region13: #{tpu_custom_call.1} parent=11 // pred_check
          %p175 = pneg %p113
        $region14: #{tpu_custom_call.1} parent=11 // pred_check_branch
          %177 = sbr.rel (%p175) target = $region16
        $region15: #{tpu_custom_call.1} parent=11 // pred_region
          _
        $region16: #{tpu_custom_call.1} parent=11 // pred_fallthru
          _
        // Predicated region
        $region17: #{tpu_custom_call.1} parent=11 // pred_check
          %p178 = pneg %p134
        $region18: #{tpu_custom_call.1} parent=11 // pred_check_branch
          %180 = sbr.rel (%p178) target = $region20
        $region19: #{tpu_custom_call.1} parent=11 // pred_region
          _
        $region20: #{tpu_custom_call.1} parent=11 // pred_fallthru
          _
      $region12: #{tpu_custom_call.1} parent=5 // pred_fallthru
        _
      %p181 = scmp.lt.s32.totalorder %s14, 2
      // Predicated region
      $region21: #{tpu_custom_call.1} parent=5 // pred_check
        %p182 = pneg %p181
      $region22: #{tpu_custom_call.1} parent=5 // pred_check_branch
        %184 = sbr.rel (%p182) target = $region24
      $region23: #{tpu_custom_call.1} parent=5 // pred_region
        // Predicated region
        $region25: #{tpu_custom_call.1} parent=23 // pred_check
          %p185 = pneg %p34
        $region26: #{tpu_custom_call.1} parent=23 // pred_check_branch
          %187 = sbr.rel (%p185) target = $region28
        $region27: #{tpu_custom_call.1} parent=23 // pred_region
          %p188 = scmp.lt.s32.totalorder %s14, 1
          %s189 = scalar_select %p188, %s14, 1
          %s190 = smul.addr %s189, 8
          %s191 = scalar_lea.vmem %s0, %s190
        $region28: #{tpu_custom_call.1} parent=23 // pred_fallthru
          _
        // Predicated region
        $region29: #{tpu_custom_call.1} parent=23 // pred_check
          %p192 = pneg %p60
        $region30: #{tpu_custom_call.1} parent=23 // pred_check_branch
          %194 = sbr.rel (%p192) target = $region32
        $region31: #{tpu_custom_call.1} parent=23 // pred_region
          %p195 = scmp.lt.s32.totalorder %s14, 1
          %s196 = scalar_select %p195, %s14, 1
          %s197 = smul.addr %s196, 8
          %s198 = scalar_lea.vmem %s1, %s197
        $region32: #{tpu_custom_call.1} parent=23 // pred_fallthru
          _
        // Predicated region
        $region33: #{tpu_custom_call.1} parent=23 // pred_check
          %p199 = pneg %p86
        $region34: #{tpu_custom_call.1} parent=23 // pred_check_branch
          %201 = sbr.rel (%p199) target = $region36
        $region35: #{tpu_custom_call.1} parent=23 // pred_region
          %p202 = scmp.lt.s32.totalorder %s14, 1
          %s203 = scalar_select %p202, %s14, 1
          %s204 = smul.addr %s203, 8
          %s205 = scalar_lea.vmem %s2, %s204
        $region36: #{tpu_custom_call.1} parent=23 // pred_fallthru
          _
      $region24: #{tpu_custom_call.1} parent=5 // pred_fallthru
        _
      %p206 = scmp.le.s32.totalorder 1, %s14
      %p207 = scmp.lt.s32.totalorder %s14, 3
      %p208 = pnand %p206, %p207
      %p209 = pneg %p208
      // Predicated region
      $region37: #{tpu_custom_call.1} parent=5 // pred_check
        _
      $region38: #{tpu_custom_call.1} parent=5 // pred_check_branch
        %211 = sbr.rel (%p208) target = $region40
      $region39: #{tpu_custom_call.1} parent=5 // pred_region
        %s212 = ssub.s32 %s14, 1
        %p213 = scmp.lt.s32.totalorder %s19, 1
        %s214 = scalar_select %p213, %s19, 1
        %s215 = smul.addr %s214, 8
        %s216 = scalar_lea.vmem %s0, %s215
        %p217 = pneg %p40
        %p218 = pneg %p37
        %p219 = scmp.lt.s32.totalorder %s19, 1
        %s220 = scalar_select %p219, %s19, 1
        %s221 = smul.addr %s220, 8
        %s222 = scalar_lea.vmem %s1, %s221
        %p223 = pneg %p66
        %p224 = pneg %p63
        %p225 = scmp.lt.s32.totalorder %s19, 1
        %s226 = scalar_select %p225, %s19, 1
        %s227 = smul.addr %s226, 8
        %s228 = scalar_lea.vmem %s2, %s227
        %p229 = pneg %p92
        %p230 = pneg %p89
        %p231 = pneg %p113
        %p232 = pneg %p110
        %p233 = pneg %p134
        %p234 = pneg %p131
        %p235 = pneg %p160
        %p236 = pneg %p157
        %s237 = sand.u32 %s147, 1
        %s238 = scalar_lea.sflag [#allocation3], %s237
        %s239 = sand.u32 %s147, 1
        %s240 = scalar_lea.vmem [#allocation2], %s239
        %p241 = scmp.lt.s32.totalorder %s19, 1
        %s242 = scalar_select %p241, %s19, 1
        %s243 = smul.addr %s242, 8
        %s244 = scalar_lea.vmem %s0, %s243
        %p245 = scmp.lt.s32.totalorder %s19, 1
        %s246 = scalar_select %p245, %s19, 1
        %s247 = smul.addr %s246, 8
        %s248 = scalar_lea.vmem %s1, %s247
        %p249 = scmp.lt.s32.totalorder %s19, 1
        %s250 = scalar_select %p249, %s19, 1
        %s251 = smul.addr %s250, 8
        %s252 = scalar_lea.vmem %s2, %s251
        %v253 = vld [vmem:[%s244] sm:$0xff]
        %v254 = vlaneseq
        %v255 = vand.u32 %v254, 127
        %256 = vset.pattern.permute.xlu0 0
        %257 = vperm.xlu0 %256, %v253
        %v258 = vpop.permute.xlu0 %257
        %vm259 = vcmp.eq.s32.totalorder %v258, %v255
        %v260 = vsel %vm259, 1, 0
        %v261 = vcvt.s32.f32 %v260
        %v262 = vld [vmem:[%s3] sm:$0xff]
        %v263 = vld [vmem:[%s3 + $0x8] sm:$0xff]
        %v264 = vld [vmem:[%s3 + $0x10] sm:$0xff]
        %v265 = vld [vmem:[%s3 + $0x18] sm:$0xff]
        %vm266 = vcmask 261120
        %v268 = vsel %vm266, %v261, 0
        %270 = vmatprep.subr.mxu0 0.0
        %271 = vmatpush1.msra.mxu0 0.0
        %272 = vmatprep.subr.mxu0 0.0
        %273 = vmatpush1.msra.mxu0 0.0
        %274 = vmatprep.subr.mxu0 0.0
        %275 = vmatpush1.msra.mxu0 0.0
        %276 = vmatprep.subr.mxu0 0.0
        %277 = vmatpush1.msra.mxu0 0.0
        %278 = vmatprep.subr.mxu0 0.0
        %279 = vmatpush1.msra.mxu0 0.0
        %280 = vmatprep.subr.mxu0 0.0
        %281 = vmatpush1.msra.mxu0 0.0
        %282 = vmatprep.subr.mxu0 0.0
        %283 = vmatpush1.msra.mxu0 0.0
        %284 = vmatprep.subr.mxu0 0.0
        %285 = vmatpush1.msra.mxu0 0.0
        %286 = vmatprep.subr.mxu0 0.0
        %287 = vmatpush1.msra.mxu0 0.0
        %288 = vmatprep.subr.mxu0 0.0
        %289 = vmatpush1.msra.mxu0 0.0
        %290 = vmatprep.subr.mxu0 0.0
        %291 = vmatpush1.msra.mxu0 0.0
        %292 = vmatprep.subr.mxu0 0.0
        %293 = vmatpush1.msra.mxu0 0.0
        %294 = vmatprep.subr.mxu0 0.0
        %v295 = vand.u32 %v265, 4294901760
        %296 = vmatpush1.msra.mxu0 %v295
        %297 = vmatprep.subr.mxu0 0.0
        %v298 = vand.u32 %v264, 4294901760
        %299 = vmatpush1.msra.mxu0 %v298
        %300 = vmatprep.subr.mxu0 0.0
        %v301 = vand.u32 %v263, 4294901760
        %302 = vmatpush1.msra.mxu0 %v301
        %303 = vmatprep.subr.mxu0 0.0
        %v304 = vand.u32 %v262, 4294901760
        %305 = vmatpush1.msra.mxu0 %v304
        %306 = vmatprep.subr.mxu0 0.0
        %307 = vmatpush2.msra.mxu0 0.0
        %308 = vmatprep.subr.mxu0 0.0
        %309 = vmatpush2.msra.mxu0 0.0
        %310 = vmatprep.subr.mxu0 0.0
        %311 = vmatpush2.msra.mxu0 0.0
        %312 = vmatprep.subr.mxu0 0.0
        %313 = vmatpush2.msra.mxu0 0.0
        %314 = vmatprep.subr.mxu0 0.0
        %315 = vmatpush2.msra.mxu0 0.0
        %316 = vmatprep.subr.mxu0 0.0
        %317 = vmatpush2.msra.mxu0 0.0
        %318 = vmatprep.subr.mxu0 0.0
        %319 = vmatpush2.msra.mxu0 0.0
        %320 = vmatprep.subr.mxu0 0.0
        %321 = vmatpush2.msra.mxu0 0.0
        %322 = vmatprep.subr.mxu0 0.0
        %323 = vmatpush2.msra.mxu0 0.0
        %324 = vmatprep.subr.mxu0 0.0
        %325 = vmatpush2.msra.mxu0 0.0
        %326 = vmatprep.subr.mxu0 0.0
        %327 = vmatpush2.msra.mxu0 0.0
        %328 = vmatprep.subr.mxu0 0.0
        %329 = vmatpush2.msra.mxu0 0.0
        %330 = vmatprep.subr.mxu0 0.0
        %331 = vmatpush2.msra.mxu0 0.0
        %332 = vmatprep.subr.mxu0 0.0
        %333 = vmatpush2.msra.mxu0 0.0
        %334 = vmatprep.subr.mxu0 0.0
        %335 = vmatpush2.msra.mxu0 0.0
        %336 = vmatprep.subr.mxu0 0.0
        %337 = vmatpush2.msra.mxu0 0.0
        %338 = vmatprep.mubr.f32.mxu0 0.0
        %v339 = vand.u32 %v268, 4294901760
        %v340 = vsub.f32 %v268, %v339
        %v341 = vand.u32 %v340, 4294901760
        %v342 = vsub.f32 %v340, %v341
        %v343 = vand.u32 %v342, 4294901760
        %344 = vmatmul.mubr.f32.gmra.mxu0 %v343
        %v345 = vpop.f32.mrf.mxu0
        %v346 = vadd.f32 0.0, %v345
        %v347 = vpop.f32.mrf.mxu0
        %348 = vdwg.mxu0
        %349 = vmatprep.subr.mxu0 0.0
        %350 = vmatpush1.msra.mxu0 0.0
        %351 = vmatprep.subr.mxu0 0.0
        %352 = vmatpush1.msra.mxu0 0.0
        %353 = vmatprep.subr.mxu0 0.0
        %354 = vmatpush1.msra.mxu0 0.0
        %355 = vmatprep.subr.mxu0 0.0
        %356 = vmatpush1.msra.mxu0 0.0
        %357 = vmatprep.subr.mxu0 0.0
        %358 = vmatpush1.msra.mxu0 0.0
        %359 = vmatprep.subr.mxu0 0.0
        %360 = vmatpush1.msra.mxu0 0.0
        %361 = vmatprep.subr.mxu0 0.0
        %362 = vmatpush1.msra.mxu0 0.0
        %363 = vmatprep.subr.mxu0 0.0
        %364 = vmatpush1.msra.mxu0 0.0
        %365 = vmatprep.subr.mxu0 0.0
        %366 = vmatpush1.msra.mxu0 0.0
        %367 = vmatprep.subr.mxu0 0.0
        %368 = vmatpush1.msra.mxu0 0.0
        %369 = vmatprep.subr.mxu0 0.0
        %370 = vmatpush1.msra.mxu0 0.0
        %371 = vmatprep.subr.mxu0 0.0
        %372 = vmatpush1.msra.mxu0 0.0
        %373 = vmatprep.subr.mxu0 0.0
        %v374 = vand.u32 %v265, 4294901760
        %v375 = vsub.f32 %v265, %v374
        %v376 = vand.u32 %v375, 4294901760
        %v377 = vsub.f32 %v375, %v376
        %v378 = vand.u32 %v377, 4294901760
        %379 = vmatpush1.msra.mxu0 %v378
        %380 = vmatprep.subr.mxu0 0.0
        %v381 = vand.u32 %v264, 4294901760
        %v382 = vsub.f32 %v264, %v381
        %v383 = vand.u32 %v382, 4294901760
        %v384 = vsub.f32 %v382, %v383
        %v385 = vand.u32 %v384, 4294901760
        %386 = vmatpush1.msra.mxu0 %v385
        %387 = vmatprep.subr.mxu0 0.0
        %v388 = vand.u32 %v263, 4294901760
        %v389 = vsub.f32 %v263, %v388
        %v390 = vand.u32 %v389, 4294901760
        %v391 = vsub.f32 %v389, %v390
        %v392 = vand.u32 %v391, 4294901760
        %393 = vmatpush1.msra.mxu0 %v392
        %394 = vmatprep.subr.mxu0 0.0
        %v395 = vand.u32 %v262, 4294901760
        %v396 = vsub.f32 %v262, %v395
        %v397 = vand.u32 %v396, 4294901760
        %v398 = vsub.f32 %v396, %v397
        %v399 = vand.u32 %v398, 4294901760
        %400 = vmatpush1.msra.mxu0 %v399
        %401 = vmatprep.subr.mxu0 0.0
        %402 = vmatpush2.msra.mxu0 0.0
        %403 = vmatprep.subr.mxu0 0.0
        %404 = vmatpush2.msra.mxu0 0.0
        %405 = vmatprep.subr.mxu0 0.0
        %406 = vmatpush2.msra.mxu0 0.0
        %407 = vmatprep.subr.mxu0 0.0
        %408 = vmatpush2.msra.mxu0 0.0
        %409 = vmatprep.subr.mxu0 0.0
        %410 = vmatpush2.msra.mxu0 0.0
        %411 = vmatprep.subr.mxu0 0.0
        %412 = vmatpush2.msra.mxu0 0.0
        %413 = vmatprep.subr.mxu0 0.0
        %414 = vmatpush2.msra.mxu0 0.0
        %415 = vmatprep.subr.mxu0 0.0
        %416 = vmatpush2.msra.mxu0 0.0
        %417 = vmatprep.subr.mxu0 0.0
        %418 = vmatpush2.msra.mxu0 0.0
        %419 = vmatprep.subr.mxu0 0.0
        %420 = vmatpush2.msra.mxu0 0.0
        %421 = vmatprep.subr.mxu0 0.0
        %422 = vmatpush2.msra.mxu0 0.0
        %423 = vmatprep.subr.mxu0 0.0
        %424 = vmatpush2.msra.mxu0 0.0
        %425 = vmatprep.subr.mxu0 0.0
        %426 = vmatpush2.msra.mxu0 0.0
        %427 = vmatprep.subr.mxu0 0.0
        %428 = vmatpush2.msra.mxu0 0.0
        %429 = vmatprep.subr.mxu0 0.0
        %430 = vmatpush2.msra.mxu0 0.0
        %431 = vmatprep.subr.mxu0 0.0
        %432 = vmatpush2.msra.mxu0 0.0
        %433 = vmatprep.mubr.f32.mxu0 0.0
        %v434 = vand.u32 %v268, 4294901760
        %435 = vmatmul.mubr.f32.gmra.mxu0 %v434
        %v436 = vpop.f32.mrf.mxu0
        %v437 = vadd.f32 %v346, %v436
        %v438 = vpop.f32.mrf.mxu0
        %439 = vdwg.mxu0
        %440 = vmatprep.subr.mxu0 0.0
        %441 = vmatpush1.msra.mxu0 0.0
        %442 = vmatprep.subr.mxu0 0.0
        %443 = vmatpush1.msra.mxu0 0.0
        %444 = vmatprep.subr.mxu0 0.0
        %445 = vmatpush1.msra.mxu0 0.0
        %446 = vmatprep.subr.mxu0 0.0
        %447 = vmatpush1.msra.mxu0 0.0
        %448 = vmatprep.subr.mxu0 0.0
        %449 = vmatpush1.msra.mxu0 0.0
        %450 = vmatprep.subr.mxu0 0.0
        %451 = vmatpush1.msra.mxu0 0.0
        %452 = vmatprep.subr.mxu0 0.0
        %453 = vmatpush1.msra.mxu0 0.0
        %454 = vmatprep.subr.mxu0 0.0
        %455 = vmatpush1.msra.mxu0 0.0
        %456 = vmatprep.subr.mxu0 0.0
        %457 = vmatpush1.msra.mxu0 0.0
        %458 = vmatprep.subr.mxu0 0.0
        %459 = vmatpush1.msra.mxu0 0.0
        %460 = vmatprep.subr.mxu0 0.0
        %461 = vmatpush1.msra.mxu0 0.0
        %462 = vmatprep.subr.mxu0 0.0
        %463 = vmatpush1.msra.mxu0 0.0
        %464 = vmatprep.subr.mxu0 0.0
        %v465 = vand.u32 %v265, 4294901760
        %v466 = vsub.f32 %v265, %v465
        %467 = vmatpush1.msra.mxu0 %v466
        %468 = vmatprep.subr.mxu0 0.0
        %v469 = vand.u32 %v264, 4294901760
        %v470 = vsub.f32 %v264, %v469
        %471 = vmatpush1.msra.mxu0 %v470
        %472 = vmatprep.subr.mxu0 0.0
        %v473 = vand.u32 %v263, 4294901760
        %v474 = vsub.f32 %v263, %v473
        %475 = vmatpush1.msra.mxu0 %v474
        %476 = vmatprep.subr.mxu0 0.0
        %v477 = vand.u32 %v262, 4294901760
        %v478 = vsub.f32 %v262, %v477
        %479 = vmatpush1.msra.mxu0 %v478
        %480 = vmatprep.subr.mxu0 0.0
        %481 = vmatpush2.msra.mxu0 0.0
        %482 = vmatprep.subr.mxu0 0.0
        %483 = vmatpush2.msra.mxu0 0.0
        %484 = vmatprep.subr.mxu0 0.0
        %485 = vmatpush2.msra.mxu0 0.0
        %486 = vmatprep.subr.mxu0 0.0
        %487 = vmatpush2.msra.mxu0 0.0
        %488 = vmatprep.subr.mxu0 0.0
        %489 = vmatpush2.msra.mxu0 0.0
        %490 = vmatprep.subr.mxu0 0.0
        %491 = vmatpush2.msra.mxu0 0.0
        %492 = vmatprep.subr.mxu0 0.0
        %493 = vmatpush2.msra.mxu0 0.0
        %494 = vmatprep.subr.mxu0 0.0
        %495 = vmatpush2.msra.mxu0 0.0
        %496 = vmatprep.subr.mxu0 0.0
        %497 = vmatpush2.msra.mxu0 0.0
        %498 = vmatprep.subr.mxu0 0.0
        %499 = vmatpush2.msra.mxu0 0.0
        %500 = vmatprep.subr.mxu0 0.0
        %501 = vmatpush2.msra.mxu0 0.0
        %502 = vmatprep.subr.mxu0 0.0
        %503 = vmatpush2.msra.mxu0 0.0
        %504 = vmatprep.subr.mxu0 0.0
        %505 = vmatpush2.msra.mxu0 0.0
        %506 = vmatprep.subr.mxu0 0.0
        %507 = vmatpush2.msra.mxu0 0.0
        %508 = vmatprep.subr.mxu0 0.0
        %509 = vmatpush2.msra.mxu0 0.0
        %510 = vmatprep.subr.mxu0 0.0
        %511 = vmatpush2.msra.mxu0 0.0
        %512 = vmatprep.mubr.f32.mxu0 0.0
        %v513 = vand.u32 %v268, 4294901760
        %v514 = vsub.f32 %v268, %v513
        %515 = vmatmul.mubr.f32.gmra.mxu0 %v514
        %v516 = vpop.f32.mrf.mxu0
        %v517 = vadd.f32 %v437, %v516
        %v518 = vpop.f32.mrf.mxu0
        %519 = vdwg.mxu0
        %520 = vmatprep.subr.mxu0 0.0
        %521 = vmatpush1.msra.mxu0 0.0
        %522 = vmatprep.subr.mxu0 0.0
        %523 = vmatpush1.msra.mxu0 0.0
        %524 = vmatprep.subr.mxu0 0.0
        %525 = vmatpush1.msra.mxu0 0.0
        %526 = vmatprep.subr.mxu0 0.0
        %527 = vmatpush1.msra.mxu0 0.0
        %528 = vmatprep.subr.mxu0 0.0
        %529 = vmatpush1.msra.mxu0 0.0
        %530 = vmatprep.subr.mxu0 0.0
        %531 = vmatpush1.msra.mxu0 0.0
        %532 = vmatprep.subr.mxu0 0.0
        %533 = vmatpush1.msra.mxu0 0.0
        %534 = vmatprep.subr.mxu0 0.0
        %535 = vmatpush1.msra.mxu0 0.0
        %536 = vmatprep.subr.mxu0 0.0
        %537 = vmatpush1.msra.mxu0 0.0
        %538 = vmatprep.subr.mxu0 0.0
        %539 = vmatpush1.msra.mxu0 0.0
        %540 = vmatprep.subr.mxu0 0.0
        %541 = vmatpush1.msra.mxu0 0.0
        %542 = vmatprep.subr.mxu0 0.0
        %543 = vmatpush1.msra.mxu0 0.0
        %544 = vmatprep.subr.mxu0 0.0
        %v545 = vand.u32 %v265, 4294901760
        %546 = vmatpush1.msra.mxu0 %v545
        %547 = vmatprep.subr.mxu0 0.0
        %v548 = vand.u32 %v264, 4294901760
        %549 = vmatpush1.msra.mxu0 %v548
        %550 = vmatprep.subr.mxu0 0.0
        %v551 = vand.u32 %v263, 4294901760
        %552 = vmatpush1.msra.mxu0 %v551
        %553 = vmatprep.subr.mxu0 0.0
        %v554 = vand.u32 %v262, 4294901760
        %555 = vmatpush1.msra.mxu0 %v554
        %556 = vmatprep.subr.mxu0 0.0
        %557 = vmatpush2.msra.mxu0 0.0
        %558 = vmatprep.subr.mxu0 0.0
        %559 = vmatpush2.msra.mxu0 0.0
        %560 = vmatprep.subr.mxu0 0.0
        %561 = vmatpush2.msra.mxu0 0.0
        %562 = vmatprep.subr.mxu0 0.0
        %563 = vmatpush2.msra.mxu0 0.0
        %564 = vmatprep.subr.mxu0 0.0
        %565 = vmatpush2.msra.mxu0 0.0
        %566 = vmatprep.subr.mxu0 0.0
        %567 = vmatpush2.msra.mxu0 0.0
        %568 = vmatprep.subr.mxu0 0.0
        %569 = vmatpush2.msra.mxu0 0.0
        %570 = vmatprep.subr.mxu0 0.0
        %571 = vmatpush2.msra.mxu0 0.0
        %572 = vmatprep.subr.mxu0 0.0
        %573 = vmatpush2.msra.mxu0 0.0
        %574 = vmatprep.subr.mxu0 0.0
        %575 = vmatpush2.msra.mxu0 0.0
        %576 = vmatprep.subr.mxu0 0.0
        %577 = vmatpush2.msra.mxu0 0.0
        %578 = vmatprep.subr.mxu0 0.0
        %579 = vmatpush2.msra.mxu0 0.0
        %580 = vmatprep.subr.mxu0 0.0
        %581 = vmatpush2.msra.mxu0 0.0
        %582 = vmatprep.subr.mxu0 0.0
        %583 = vmatpush2.msra.mxu0 0.0
        %584 = vmatprep.subr.mxu0 0.0
        %585 = vmatpush2.msra.mxu0 0.0
        %586 = vmatprep.subr.mxu0 0.0
        %587 = vmatpush2.msra.mxu0 0.0
        %588 = vmatprep.mubr.f32.mxu0 0.0
        %v589 = vand.u32 %v268, 4294901760
        %v590 = vsub.f32 %v268, %v589
        %v591 = vand.u32 %v590, 4294901760
        %592 = vmatmul.mubr.f32.gmra.mxu0 %v591
        %v593 = vpop.f32.mrf.mxu0
        %v594 = vadd.f32 %v517, %v593
        %v595 = vpop.f32.mrf.mxu0
        %596 = vdwg.mxu0
        %597 = vmatprep.subr.mxu0 0.0
        %598 = vmatpush1.msra.mxu0 0.0
        %599 = vmatprep.subr.mxu0 0.0
        %600 = vmatpush1.msra.mxu0 0.0
        %601 = vmatprep.subr.mxu0 0.0
        %602 = vmatpush1.msra.mxu0 0.0
        %603 = vmatprep.subr.mxu0 0.0
        %604 = vmatpush1.msra.mxu0 0.0
        %605 = vmatprep.subr.mxu0 0.0
        %606 = vmatpush1.msra.mxu0 0.0
        %607 = vmatprep.subr.mxu0 0.0
        %608 = vmatpush1.msra.mxu0 0.0
        %609 = vmatprep.subr.mxu0 0.0
        %610 = vmatpush1.msra.mxu0 0.0
        %611 = vmatprep.subr.mxu0 0.0
        %612 = vmatpush1.msra.mxu0 0.0
        %613 = vmatprep.subr.mxu0 0.0
        %614 = vmatpush1.msra.mxu0 0.0
        %615 = vmatprep.subr.mxu0 0.0
        %616 = vmatpush1.msra.mxu0 0.0
        %617 = vmatprep.subr.mxu0 0.0
        %618 = vmatpush1.msra.mxu0 0.0
        %619 = vmatprep.subr.mxu0 0.0
        %620 = vmatpush1.msra.mxu0 0.0
        %621 = vmatprep.subr.mxu0 0.0
        %v622 = vand.u32 %v265, 4294901760
        %v623 = vsub.f32 %v265, %v622
        %v624 = vand.u32 %v623, 4294901760
        %625 = vmatpush1.msra.mxu0 %v624
        %626 = vmatprep.subr.mxu0 0.0
        %v627 = vand.u32 %v264, 4294901760
        %v628 = vsub.f32 %v264, %v627
        %v629 = vand.u32 %v628, 4294901760
        %630 = vmatpush1.msra.mxu0 %v629
        %631 = vmatprep.subr.mxu0 0.0
        %v632 = vand.u32 %v263, 4294901760
        %v633 = vsub.f32 %v263, %v632
        %v634 = vand.u32 %v633, 4294901760
        %635 = vmatpush1.msra.mxu0 %v634
        %636 = vmatprep.subr.mxu0 0.0
        %v637 = vand.u32 %v262, 4294901760
        %v638 = vsub.f32 %v262, %v637
        %v639 = vand.u32 %v638, 4294901760
        %640 = vmatpush1.msra.mxu0 %v639
        %641 = vmatprep.subr.mxu0 0.0
        %642 = vmatpush2.msra.mxu0 0.0
        %643 = vmatprep.subr.mxu0 0.0
        %644 = vmatpush2.msra.mxu0 0.0
        %645 = vmatprep.subr.mxu0 0.0
        %646 = vmatpush2.msra.mxu0 0.0
        %647 = vmatprep.subr.mxu0 0.0
        %648 = vmatpush2.msra.mxu0 0.0
        %649 = vmatprep.subr.mxu0 0.0
        %650 = vmatpush2.msra.mxu0 0.0
        %651 = vmatprep.subr.mxu0 0.0
        %652 = vmatpush2.msra.mxu0 0.0
        %653 = vmatprep.subr.mxu0 0.0
        %654 = vmatpush2.msra.mxu0 0.0
        %655 = vmatprep.subr.mxu0 0.0
        %656 = vmatpush2.msra.mxu0 0.0
        %657 = vmatprep.subr.mxu0 0.0
        %658 = vmatpush2.msra.mxu0 0.0
        %659 = vmatprep.subr.mxu0 0.0
        %660 = vmatpush2.msra.mxu0 0.0
        %661 = vmatprep.subr.mxu0 0.0
        %662 = vmatpush2.msra.mxu0 0.0
        %663 = vmatprep.subr.mxu0 0.0
        %664 = vmatpush2.msra.mxu0 0.0
        %665 = vmatprep.subr.mxu0 0.0
        %666 = vmatpush2.msra.mxu0 0.0
        %667 = vmatprep.subr.mxu0 0.0
        %668 = vmatpush2.msra.mxu0 0.0
        %669 = vmatprep.subr.mxu0 0.0
        %670 = vmatpush2.msra.mxu0 0.0
        %671 = vmatprep.subr.mxu0 0.0
        %672 = vmatpush2.msra.mxu0 0.0
        %673 = vmatprep.mubr.f32.mxu0 0.0
        %v674 = vand.u32 %v268, 4294901760
        %675 = vmatmul.mubr.f32.gmra.mxu0 %v674
        %v676 = vpop.f32.mrf.mxu0
        %v677 = vadd.f32 %v594, %v676
        %v678 = vpop.f32.mrf.mxu0
        %679 = vdwg.mxu0
        %680 = vmatprep.subr.mxu0 0.0
        %681 = vmatpush1.msra.mxu0 0.0
        %682 = vmatprep.subr.mxu0 0.0
        %683 = vmatpush1.msra.mxu0 0.0
        %684 = vmatprep.subr.mxu0 0.0
        %685 = vmatpush1.msra.mxu0 0.0
        %686 = vmatprep.subr.mxu0 0.0
        %687 = vmatpush1.msra.mxu0 0.0
        %688 = vmatprep.subr.mxu0 0.0
        %689 = vmatpush1.msra.mxu0 0.0
        %690 = vmatprep.subr.mxu0 0.0
        %691 = vmatpush1.msra.mxu0 0.0
        %692 = vmatprep.subr.mxu0 0.0
        %693 = vmatpush1.msra.mxu0 0.0
        %694 = vmatprep.subr.mxu0 0.0
        %695 = vmatpush1.msra.mxu0 0.0
        %696 = vmatprep.subr.mxu0 0.0
        %697 = vmatpush1.msra.mxu0 0.0
        %698 = vmatprep.subr.mxu0 0.0
        %699 = vmatpush1.msra.mxu0 0.0
        %700 = vmatprep.subr.mxu0 0.0
        %701 = vmatpush1.msra.mxu0 0.0
        %702 = vmatprep.subr.mxu0 0.0
        %703 = vmatpush1.msra.mxu0 0.0
        %704 = vmatprep.subr.mxu0 0.0
        %v705 = vand.u32 %v265, 4294901760
        %706 = vmatpush1.msra.mxu0 %v705
        %707 = vmatprep.subr.mxu0 0.0
        %v708 = vand.u32 %v264, 4294901760
        %709 = vmatpush1.msra.mxu0 %v708
        %710 = vmatprep.subr.mxu0 0.0
        %v711 = vand.u32 %v263, 4294901760
        %712 = vmatpush1.msra.mxu0 %v711
        %713 = vmatprep.subr.mxu0 0.0
        %v714 = vand.u32 %v262, 4294901760
        %715 = vmatpush1.msra.mxu0 %v714
        %716 = vmatprep.subr.mxu0 0.0
        %717 = vmatpush2.msra.mxu0 0.0
        %718 = vmatprep.subr.mxu0 0.0
        %719 = vmatpush2.msra.mxu0 0.0
        %720 = vmatprep.subr.mxu0 0.0
        %721 = vmatpush2.msra.mxu0 0.0
        %722 = vmatprep.subr.mxu0 0.0
        %723 = vmatpush2.msra.mxu0 0.0
        %724 = vmatprep.subr.mxu0 0.0
        %725 = vmatpush2.msra.mxu0 0.0
        %726 = vmatprep.subr.mxu0 0.0
        %727 = vmatpush2.msra.mxu0 0.0
        %728 = vmatprep.subr.mxu0 0.0
        %729 = vmatpush2.msra.mxu0 0.0
        %730 = vmatprep.subr.mxu0 0.0
        %731 = vmatpush2.msra.mxu0 0.0
        %732 = vmatprep.subr.mxu0 0.0
        %733 = vmatpush2.msra.mxu0 0.0
        %734 = vmatprep.subr.mxu0 0.0
        %735 = vmatpush2.msra.mxu0 0.0
        %736 = vmatprep.subr.mxu0 0.0
        %737 = vmatpush2.msra.mxu0 0.0
        %738 = vmatprep.subr.mxu0 0.0
        %739 = vmatpush2.msra.mxu0 0.0
        %740 = vmatprep.subr.mxu0 0.0
        %741 = vmatpush2.msra.mxu0 0.0
        %742 = vmatprep.subr.mxu0 0.0
        %743 = vmatpush2.msra.mxu0 0.0
        %744 = vmatprep.subr.mxu0 0.0
        %745 = vmatpush2.msra.mxu0 0.0
        %746 = vmatprep.subr.mxu0 0.0
        %747 = vmatpush2.msra.mxu0 0.0
        %748 = vmatprep.mubr.f32.mxu0 0.0
        %v749 = vand.u32 %v268, 4294901760
        %750 = vmatmul.mubr.f32.gmra.mxu0 %v749
        %v751 = vpop.f32.mrf.mxu0
        %v752 = vadd.f32 %v677, %v751
        %v753 = vpop.f32.mrf.mxu0
        %754 = vdwg.mxu0
        %v755 = vld [vmem:[%s248] sm:$0xff]
        %756 = vset.pattern.permute.xlu0 0
        %757 = vperm.xlu0 %756, %v755
        %v758 = vpop.permute.xlu0 %757
        %vm759 = vcmp.eq.s32.totalorder %v758, %v255
        %v760 = vsel %vm759, 1, 0
        %v761 = vcvt.s32.f32 %v760
        %v762 = vld [vmem:[%s4] sm:$0xff]
        %v763 = vld [vmem:[%s4 + $0x8] sm:$0xff]
        %v764 = vld [vmem:[%s4 + $0x10] sm:$0xff]
        %v765 = vld [vmem:[%s4 + $0x18] sm:$0xff]
        %v766 = vld [vmem:[%s4 + $0x20] sm:$0xff]
        %v767 = vld [vmem:[%s4 + $0x28] sm:$0xff]
        %v768 = vld [vmem:[%s4 + $0x30] sm:$0xff]
        %v769 = vld [vmem:[%s4 + $0x38] sm:$0xff]
        %vm770 = vcmask 523264
        %v772 = vsel %vm770, %v761, 0
        %774 = vmatprep.subr.mxu0 0.0
        %775 = vmatpush1.msra.mxu0 0.0
        %776 = vmatprep.subr.mxu0 0.0
        %777 = vmatpush1.msra.mxu0 0.0
        %778 = vmatprep.subr.mxu0 0.0
        %779 = vmatpush1.msra.mxu0 0.0
        %780 = vmatprep.subr.mxu0 0.0
        %781 = vmatpush1.msra.mxu0 0.0
        %782 = vmatprep.subr.mxu0 0.0
        %783 = vmatpush1.msra.mxu0 0.0
        %784 = vmatprep.subr.mxu0 0.0
        %785 = vmatpush1.msra.mxu0 0.0
        %786 = vmatprep.subr.mxu0 0.0
        %787 = vmatpush1.msra.mxu0 0.0
        %788 = vmatprep.subr.mxu0 0.0
        %789 = vmatpush1.msra.mxu0 0.0
        %790 = vmatprep.subr.mxu0 0.0
        %v791 = vand.u32 %v769, 4294901760
        %792 = vmatpush1.msra.mxu0 %v791
        %793 = vmatprep.subr.mxu0 0.0
        %v794 = vand.u32 %v768, 4294901760
        %795 = vmatpush1.msra.mxu0 %v794
        %796 = vmatprep.subr.mxu0 0.0
        %v797 = vand.u32 %v767, 4294901760
        %798 = vmatpush1.msra.mxu0 %v797
        %799 = vmatprep.subr.mxu0 0.0
        %v800 = vand.u32 %v766, 4294901760
        %801 = vmatpush1.msra.mxu0 %v800
        %802 = vmatprep.subr.mxu0 0.0
        %v803 = vand.u32 %v765, 4294901760
        %804 = vmatpush1.msra.mxu0 %v803
        %805 = vmatprep.subr.mxu0 0.0
        %v806 = vand.u32 %v764, 4294901760
        %807 = vmatpush1.msra.mxu0 %v806
        %808 = vmatprep.subr.mxu0 0.0
        %v809 = vand.u32 %v763, 4294901760
        %810 = vmatpush1.msra.mxu0 %v809
        %811 = vmatprep.subr.mxu0 0.0
        %v812 = vand.u32 %v762, 4294901760
        %813 = vmatpush1.msra.mxu0 %v812
        %814 = vmatprep.subr.mxu0 0.0
        %815 = vmatpush2.msra.mxu0 0.0
        %816 = vmatprep.subr.mxu0 0.0
        %817 = vmatpush2.msra.mxu0 0.0
        %818 = vmatprep.subr.mxu0 0.0
        %819 = vmatpush2.msra.mxu0 0.0
        %820 = vmatprep.subr.mxu0 0.0
        %821 = vmatpush2.msra.mxu0 0.0
        %822 = vmatprep.subr.mxu0 0.0
        %823 = vmatpush2.msra.mxu0 0.0
        %824 = vmatprep.subr.mxu0 0.0
        %825 = vmatpush2.msra.mxu0 0.0
        %826 = vmatprep.subr.mxu0 0.0
        %827 = vmatpush2.msra.mxu0 0.0
        %828 = vmatprep.subr.mxu0 0.0
        %829 = vmatpush2.msra.mxu0 0.0
        %830 = vmatprep.subr.mxu0 0.0
        %831 = vmatpush2.msra.mxu0 0.0
        %832 = vmatprep.subr.mxu0 0.0
        %833 = vmatpush2.msra.mxu0 0.0
        %834 = vmatprep.subr.mxu0 0.0
        %835 = vmatpush2.msra.mxu0 0.0
        %836 = vmatprep.subr.mxu0 0.0
        %837 = vmatpush2.msra.mxu0 0.0
        %838 = vmatprep.subr.mxu0 0.0
        %839 = vmatpush2.msra.mxu0 0.0
        %840 = vmatprep.subr.mxu0 0.0
        %841 = vmatpush2.msra.mxu0 0.0
        %842 = vmatprep.subr.mxu0 0.0
        %843 = vmatpush2.msra.mxu0 0.0
        %844 = vmatprep.subr.mxu0 0.0
        %845 = vmatpush2.msra.mxu0 0.0
        %846 = vmatprep.mubr.f32.mxu0 0.0
        %v847 = vand.u32 %v772, 4294901760
        %v848 = vsub.f32 %v772, %v847
        %v849 = vand.u32 %v848, 4294901760
        %v850 = vsub.f32 %v848, %v849
        %v851 = vand.u32 %v850, 4294901760
        %852 = vmatmul.mubr.f32.gmra.mxu0 %v851
        %v853 = vpop.f32.mrf.mxu0
        %v854 = vadd.f32 0.0, %v853
        %v855 = vpop.f32.mrf.mxu0
        %856 = vdwg.mxu0
        %857 = vmatprep.subr.mxu0 0.0
        %858 = vmatpush1.msra.mxu0 0.0
        %859 = vmatprep.subr.mxu0 0.0
        %860 = vmatpush1.msra.mxu0 0.0
        %861 = vmatprep.subr.mxu0 0.0
        %862 = vmatpush1.msra.mxu0 0.0
        %863 = vmatprep.subr.mxu0 0.0
        %864 = vmatpush1.msra.mxu0 0.0
        %865 = vmatprep.subr.mxu0 0.0
        %866 = vmatpush1.msra.mxu0 0.0
        %867 = vmatprep.subr.mxu0 0.0
        %868 = vmatpush1.msra.mxu0 0.0
        %869 = vmatprep.subr.mxu0 0.0
        %870 = vmatpush1.msra.mxu0 0.0
        %871 = vmatprep.subr.mxu0 0.0
        %872 = vmatpush1.msra.mxu0 0.0
        %873 = vmatprep.subr.mxu0 0.0
        %v874 = vand.u32 %v769, 4294901760
        %v875 = vsub.f32 %v769, %v874
        %v876 = vand.u32 %v875, 4294901760
        %v877 = vsub.f32 %v875, %v876
        %v878 = vand.u32 %v877, 4294901760
        %879 = vmatpush1.msra.mxu0 %v878
        %880 = vmatprep.subr.mxu0 0.0
        %v881 = vand.u32 %v768, 4294901760
        %v882 = vsub.f32 %v768, %v881
        %v883 = vand.u32 %v882, 4294901760
        %v884 = vsub.f32 %v882, %v883
        %v885 = vand.u32 %v884, 4294901760
        %886 = vmatpush1.msra.mxu0 %v885
        %887 = vmatprep.subr.mxu0 0.0
        %v888 = vand.u32 %v767, 4294901760
        %v889 = vsub.f32 %v767, %v888
        %v890 = vand.u32 %v889, 4294901760
        %v891 = vsub.f32 %v889, %v890
        %v892 = vand.u32 %v891, 4294901760
        %893 = vmatpush1.msra.mxu0 %v892
        %894 = vmatprep.subr.mxu0 0.0
        %v895 = vand.u32 %v766, 4294901760
        %v896 = vsub.f32 %v766, %v895
        %v897 = vand.u32 %v896, 4294901760
        %v898 = vsub.f32 %v896, %v897
        %v899 = vand.u32 %v898, 4294901760
        %900 = vmatpush1.msra.mxu0 %v899
        %901 = vmatprep.subr.mxu0 0.0
        %v902 = vand.u32 %v765, 4294901760
        %v903 = vsub.f32 %v765, %v902
        %v904 = vand.u32 %v903, 4294901760
        %v905 = vsub.f32 %v903, %v904
        %v906 = vand.u32 %v905, 4294901760
        %907 = vmatpush1.msra.mxu0 %v906
        %908 = vmatprep.subr.mxu0 0.0
        %v909 = vand.u32 %v764, 4294901760
        %v910 = vsub.f32 %v764, %v909
        %v911 = vand.u32 %v910, 4294901760
        %v912 = vsub.f32 %v910, %v911
        %v913 = vand.u32 %v912, 4294901760
        %914 = vmatpush1.msra.mxu0 %v913
        %915 = vmatprep.subr.mxu0 0.0
        %v916 = vand.u32 %v763, 4294901760
        %v917 = vsub.f32 %v763, %v916
        %v918 = vand.u32 %v917, 4294901760
        %v919 = vsub.f32 %v917, %v918
        %v920 = vand.u32 %v919, 4294901760
        %921 = vmatpush1.msra.mxu0 %v920
        %922 = vmatprep.subr.mxu0 0.0
        %v923 = vand.u32 %v762, 4294901760
        %v924 = vsub.f32 %v762, %v923
        %v925 = vand.u32 %v924, 4294901760
        %v926 = vsub.f32 %v924, %v925
        %v927 = vand.u32 %v926, 4294901760
        %928 = vmatpush1.msra.mxu0 %v927
        %929 = vmatprep.subr.mxu0 0.0
        %930 = vmatpush2.msra.mxu0 0.0
        %931 = vmatprep.subr.mxu0 0.0
        %932 = vmatpush2.msra.mxu0 0.0
        %933 = vmatprep.subr.mxu0 0.0
        %934 = vmatpush2.msra.mxu0 0.0
        %935 = vmatprep.subr.mxu0 0.0
        %936 = vmatpush2.msra.mxu0 0.0
        %937 = vmatprep.subr.mxu0 0.0
        %938 = vmatpush2.msra.mxu0 0.0
        %939 = vmatprep.subr.mxu0 0.0
        %940 = vmatpush2.msra.mxu0 0.0
        %941 = vmatprep.subr.mxu0 0.0
        %942 = vmatpush2.msra.mxu0 0.0
        %943 = vmatprep.subr.mxu0 0.0
        %944 = vmatpush2.msra.mxu0 0.0
        %945 = vmatprep.subr.mxu0 0.0
        %946 = vmatpush2.msra.mxu0 0.0
        %947 = vmatprep.subr.mxu0 0.0
        %948 = vmatpush2.msra.mxu0 0.0
        %949 = vmatprep.subr.mxu0 0.0
        %950 = vmatpush2.msra.mxu0 0.0
        %951 = vmatprep.subr.mxu0 0.0
        %952 = vmatpush2.msra.mxu0 0.0
        %953 = vmatprep.subr.mxu0 0.0
        %954 = vmatpush2.msra.mxu0 0.0
        %955 = vmatprep.subr.mxu0 0.0
        %956 = vmatpush2.msra.mxu0 0.0
        %957 = vmatprep.subr.mxu0 0.0
        %958 = vmatpush2.msra.mxu0 0.0
        %959 = vmatprep.subr.mxu0 0.0
        %960 = vmatpush2.msra.mxu0 0.0
        %961 = vmatprep.mubr.f32.mxu0 0.0
        %v962 = vand.u32 %v772, 4294901760
        %963 = vmatmul.mubr.f32.gmra.mxu0 %v962
        %v964 = vpop.f32.mrf.mxu0
        %v965 = vadd.f32 %v854, %v964
        %v966 = vpop.f32.mrf.mxu0
        %967 = vdwg.mxu0
        %968 = vmatprep.subr.mxu0 0.0
        %969 = vmatpush1.msra.mxu0 0.0
        %970 = vmatprep.subr.mxu0 0.0
        %971 = vmatpush1.msra.mxu0 0.0
        %972 = vmatprep.subr.mxu0 0.0
        %973 = vmatpush1.msra.mxu0 0.0
        %974 = vmatprep.subr.mxu0 0.0
        %975 = vmatpush1.msra.mxu0 0.0
        %976 = vmatprep.subr.mxu0 0.0
        %977 = vmatpush1.msra.mxu0 0.0
        %978 = vmatprep.subr.mxu0 0.0
        %979 = vmatpush1.msra.mxu0 0.0
        %980 = vmatprep.subr.mxu0 0.0
        %981 = vmatpush1.msra.mxu0 0.0
        %982 = vmatprep.subr.mxu0 0.0
        %983 = vmatpush1.msra.mxu0 0.0
        %984 = vmatprep.subr.mxu0 0.0
        %v985 = vand.u32 %v769, 4294901760
        %v986 = vsub.f32 %v769, %v985
        %987 = vmatpush1.msra.mxu0 %v986
        %988 = vmatprep.subr.mxu0 0.0
        %v989 = vand.u32 %v768, 4294901760
        %v990 = vsub.f32 %v768, %v989
        %991 = vmatpush1.msra.mxu0 %v990
        %992 = vmatprep.subr.mxu0 0.0
        %v993 = vand.u32 %v767, 4294901760
        %v994 = vsub.f32 %v767, %v993
        %995 = vmatpush1.msra.mxu0 %v994
        %996 = vmatprep.subr.mxu0 0.0
        %v997 = vand.u32 %v766, 4294901760
        %v998 = vsub.f32 %v766, %v997
        %999 = vmatpush1.msra.mxu0 %v998
        %1000 = vmatprep.subr.mxu0 0.0
        %v1001 = vand.u32 %v765, 4294901760
        %v1002 = vsub.f32 %v765, %v1001
        %1003 = vmatpush1.msra.mxu0 %v1002
        %1004 = vmatprep.subr.mxu0 0.0
        %v1005 = vand.u32 %v764, 4294901760
        %v1006 = vsub.f32 %v764, %v1005
        %1007 = vmatpush1.msra.mxu0 %v1006
        %1008 = vmatprep.subr.mxu0 0.0
        %v1009 = vand.u32 %v763, 4294901760
        %v1010 = vsub.f32 %v763, %v1009
        %1011 = vmatpush1.msra.mxu0 %v1010
        %1012 = vmatprep.subr.mxu0 0.0
        %v1013 = vand.u32 %v762, 4294901760
        %v1014 = vsub.f32 %v762, %v1013
        %1015 = vmatpush1.msra.mxu0 %v1014
        %1016 = vmatprep.subr.mxu0 0.0
        %1017 = vmatpush2.msra.mxu0 0.0
        %1018 = vmatprep.subr.mxu0 0.0
        %1019 = vmatpush2.msra.mxu0 0.0
        %1020 = vmatprep.subr.mxu0 0.0
        %1021 = vmatpush2.msra.mxu0 0.0
        %1022 = vmatprep.subr.mxu0 0.0
        %1023 = vmatpush2.msra.mxu0 0.0
        %1024 = vmatprep.subr.mxu0 0.0
        %1025 = vmatpush2.msra.mxu0 0.0
        %1026 = vmatprep.subr.mxu0 0.0
        %1027 = vmatpush2.msra.mxu0 0.0
        %1028 = vmatprep.subr.mxu0 0.0
        %1029 = vmatpush2.msra.mxu0 0.0
        %1030 = vmatprep.subr.mxu0 0.0
        %1031 = vmatpush2.msra.mxu0 0.0
        %1032 = vmatprep.subr.mxu0 0.0
        %1033 = vmatpush2.msra.mxu0 0.0
        %1034 = vmatprep.subr.mxu0 0.0
        %1035 = vmatpush2.msra.mxu0 0.0
        %1036 = vmatprep.subr.mxu0 0.0
        %1037 = vmatpush2.msra.mxu0 0.0
        %1038 = vmatprep.subr.mxu0 0.0
        %1039 = vmatpush2.msra.mxu0 0.0
        %1040 = vmatprep.subr.mxu0 0.0
        %1041 = vmatpush2.msra.mxu0 0.0
        %1042 = vmatprep.subr.mxu0 0.0
        %1043 = vmatpush2.msra.mxu0 0.0
        %1044 = vmatprep.subr.mxu0 0.0
        %1045 = vmatpush2.msra.mxu0 0.0
        %1046 = vmatprep.subr.mxu0 0.0
        %1047 = vmatpush2.msra.mxu0 0.0
        %1048 = vmatprep.mubr.f32.mxu0 0.0
        %v1049 = vand.u32 %v772, 4294901760
        %v1050 = vsub.f32 %v772, %v1049
        %1051 = vmatmul.mubr.f32.gmra.mxu0 %v1050
        %v1052 = vpop.f32.mrf.mxu0
        %v1053 = vadd.f32 %v965, %v1052
        %v1054 = vpop.f32.mrf.mxu0
        %1055 = vdwg.mxu0
        %1056 = vmatprep.subr.mxu0 0.0
        %1057 = vmatpush1.msra.mxu0 0.0
        %1058 = vmatprep.subr.mxu0 0.0
        %1059 = vmatpush1.msra.mxu0 0.0
        %1060 = vmatprep.subr.mxu0 0.0
        %1061 = vmatpush1.msra.mxu0 0.0
        %1062 = vmatprep.subr.mxu0 0.0
        %1063 = vmatpush1.msra.mxu0 0.0
        %1064 = vmatprep.subr.mxu0 0.0
        %1065 = vmatpush1.msra.mxu0 0.0
        %1066 = vmatprep.subr.mxu0 0.0
        %1067 = vmatpush1.msra.mxu0 0.0
        %1068 = vmatprep.subr.mxu0 0.0
        %1069 = vmatpush1.msra.mxu0 0.0
        %1070 = vmatprep.subr.mxu0 0.0
        %1071 = vmatpush1.msra.mxu0 0.0
        %1072 = vmatprep.subr.mxu0 0.0
        %v1073 = vand.u32 %v769, 4294901760
        %1074 = vmatpush1.msra.mxu0 %v1073
        %1075 = vmatprep.subr.mxu0 0.0
        %v1076 = vand.u32 %v768, 4294901760
        %1077 = vmatpush1.msra.mxu0 %v1076
        %1078 = vmatprep.subr.mxu0 0.0
        %v1079 = vand.u32 %v767, 4294901760
        %1080 = vmatpush1.msra.mxu0 %v1079
        %1081 = vmatprep.subr.mxu0 0.0
        %v1082 = vand.u32 %v766, 4294901760
        %1083 = vmatpush1.msra.mxu0 %v1082
        %1084 = vmatprep.subr.mxu0 0.0
        %v1085 = vand.u32 %v765, 4294901760
        %1086 = vmatpush1.msra.mxu0 %v1085
        %1087 = vmatprep.subr.mxu0 0.0
        %v1088 = vand.u32 %v764, 4294901760
        %1089 = vmatpush1.msra.mxu0 %v1088
        %1090 = vmatprep.subr.mxu0 0.0
        %v1091 = vand.u32 %v763, 4294901760
        %1092 = vmatpush1.msra.mxu0 %v1091
        %1093 = vmatprep.subr.mxu0 0.0
        %v1094 = vand.u32 %v762, 4294901760
        %1095 = vmatpush1.msra.mxu0 %v1094
        %1096 = vmatprep.subr.mxu0 0.0
        %1097 = vmatpush2.msra.mxu0 0.0
        %1098 = vmatprep.subr.mxu0 0.0
        %1099 = vmatpush2.msra.mxu0 0.0
        %1100 = vmatprep.subr.mxu0 0.0
        %1101 = vmatpush2.msra.mxu0 0.0
        %1102 = vmatprep.subr.mxu0 0.0
        %1103 = vmatpush2.msra.mxu0 0.0
        %1104 = vmatprep.subr.mxu0 0.0
        %1105 = vmatpush2.msra.mxu0 0.0
        %1106 = vmatprep.subr.mxu0 0.0
        %1107 = vmatpush2.msra.mxu0 0.0
        %1108 = vmatprep.subr.mxu0 0.0
        %1109 = vmatpush2.msra.mxu0 0.0
        %1110 = vmatprep.subr.mxu0 0.0
        %1111 = vmatpush2.msra.mxu0 0.0
        %1112 = vmatprep.subr.mxu0 0.0
        %1113 = vmatpush2.msra.mxu0 0.0
        %1114 = vmatprep.subr.mxu0 0.0
        %1115 = vmatpush2.msra.mxu0 0.0
        %1116 = vmatprep.subr.mxu0 0.0
        %1117 = vmatpush2.msra.mxu0 0.0
        %1118 = vmatprep.subr.mxu0 0.0
        %1119 = vmatpush2.msra.mxu0 0.0
        %1120 = vmatprep.subr.mxu0 0.0
        %1121 = vmatpush2.msra.mxu0 0.0
        %1122 = vmatprep.subr.mxu0 0.0
        %1123 = vmatpush2.msra.mxu0 0.0
        %1124 = vmatprep.subr.mxu0 0.0
        %1125 = vmatpush2.msra.mxu0 0.0
        %1126 = vmatprep.subr.mxu0 0.0
        %1127 = vmatpush2.msra.mxu0 0.0
        %1128 = vmatprep.mubr.f32.mxu0 0.0
        %v1129 = vand.u32 %v772, 4294901760
        %v1130 = vsub.f32 %v772, %v1129
        %v1131 = vand.u32 %v1130, 4294901760
        %1132 = vmatmul.mubr.f32.gmra.mxu0 %v1131
        %v1133 = vpop.f32.mrf.mxu0
        %v1134 = vadd.f32 %v1053, %v1133
        %v1135 = vpop.f32.mrf.mxu0
        %1136 = vdwg.mxu0
        %1137 = vmatprep.subr.mxu0 0.0
        %1138 = vmatpush1.msra.mxu0 0.0
        %1139 = vmatprep.subr.mxu0 0.0
        %1140 = vmatpush1.msra.mxu0 0.0
        %1141 = vmatprep.subr.mxu0 0.0
        %1142 = vmatpush1.msra.mxu0 0.0
        %1143 = vmatprep.subr.mxu0 0.0
        %1144 = vmatpush1.msra.mxu0 0.0
        %1145 = vmatprep.subr.mxu0 0.0
        %1146 = vmatpush1.msra.mxu0 0.0
        %1147 = vmatprep.subr.mxu0 0.0
        %1148 = vmatpush1.msra.mxu0 0.0
        %1149 = vmatprep.subr.mxu0 0.0
        %1150 = vmatpush1.msra.mxu0 0.0
        %1151 = vmatprep.subr.mxu0 0.0
        %1152 = vmatpush1.msra.mxu0 0.0
        %1153 = vmatprep.subr.mxu0 0.0
        %v1154 = vand.u32 %v769, 4294901760
        %v1155 = vsub.f32 %v769, %v1154
        %v1156 = vand.u32 %v1155, 4294901760
        %1157 = vmatpush1.msra.mxu0 %v1156
        %1158 = vmatprep.subr.mxu0 0.0
        %v1159 = vand.u32 %v768, 4294901760
        %v1160 = vsub.f32 %v768, %v1159
        %v1161 = vand.u32 %v1160, 4294901760
        %1162 = vmatpush1.msra.mxu0 %v1161
        %1163 = vmatprep.subr.mxu0 0.0
        %v1164 = vand.u32 %v767, 4294901760
        %v1165 = vsub.f32 %v767, %v1164
        %v1166 = vand.u32 %v1165, 4294901760
        %1167 = vmatpush1.msra.mxu0 %v1166
        %1168 = vmatprep.subr.mxu0 0.0
        %v1169 = vand.u32 %v766, 4294901760
        %v1170 = vsub.f32 %v766, %v1169
        %v1171 = vand.u32 %v1170, 4294901760
        %1172 = vmatpush1.msra.mxu0 %v1171
        %1173 = vmatprep.subr.mxu0 0.0
        %v1174 = vand.u32 %v765, 4294901760
        %v1175 = vsub.f32 %v765, %v1174
        %v1176 = vand.u32 %v1175, 4294901760
        %1177 = vmatpush1.msra.mxu0 %v1176
        %1178 = vmatprep.subr.mxu0 0.0
        %v1179 = vand.u32 %v764, 4294901760
        %v1180 = vsub.f32 %v764, %v1179
        %v1181 = vand.u32 %v1180, 4294901760
        %1182 = vmatpush1.msra.mxu0 %v1181
        %1183 = vmatprep.subr.mxu0 0.0
        %v1184 = vand.u32 %v763, 4294901760
        %v1185 = vsub.f32 %v763, %v1184
        %v1186 = vand.u32 %v1185, 4294901760
        %1187 = vmatpush1.msra.mxu0 %v1186
        %1188 = vmatprep.subr.mxu0 0.0
        %v1189 = vand.u32 %v762, 4294901760
        %v1190 = vsub.f32 %v762, %v1189
        %v1191 = vand.u32 %v1190, 4294901760
        %1192 = vmatpush1.msra.mxu0 %v1191
        %1193 = vmatprep.subr.mxu0 0.0
        %1194 = vmatpush2.msra.mxu0 0.0
        %1195 = vmatprep.subr.mxu0 0.0
        %1196 = vmatpush2.msra.mxu0 0.0
        %1197 = vmatprep.subr.mxu0 0.0
        %1198 = vmatpush2.msra.mxu0 0.0
        %1199 = vmatprep.subr.mxu0 0.0
        %1200 = vmatpush2.msra.mxu0 0.0
        %1201 = vmatprep.subr.mxu0 0.0
        %1202 = vmatpush2.msra.mxu0 0.0
        %1203 = vmatprep.subr.mxu0 0.0
        %1204 = vmatpush2.msra.mxu0 0.0
        %1205 = vmatprep.subr.mxu0 0.0
        %1206 = vmatpush2.msra.mxu0 0.0
        %1207 = vmatprep.subr.mxu0 0.0
        %1208 = vmatpush2.msra.mxu0 0.0
        %1209 = vmatprep.subr.mxu0 0.0
        %1210 = vmatpush2.msra.mxu0 0.0
        %1211 = vmatprep.subr.mxu0 0.0
        %1212 = vmatpush2.msra.mxu0 0.0
        %1213 = vmatprep.subr.mxu0 0.0
        %1214 = vmatpush2.msra.mxu0 0.0
        %1215 = vmatprep.subr.mxu0 0.0
        %1216 = vmatpush2.msra.mxu0 0.0
        %1217 = vmatprep.subr.mxu0 0.0
        %1218 = vmatpush2.msra.mxu0 0.0
        %1219 = vmatprep.subr.mxu0 0.0
        %1220 = vmatpush2.msra.mxu0 0.0
        %1221 = vmatprep.subr.mxu0 0.0
        %1222 = vmatpush2.msra.mxu0 0.0
        %1223 = vmatprep.subr.mxu0 0.0
        %1224 = vmatpush2.msra.mxu0 0.0
        %1225 = vmatprep.mubr.f32.mxu0 0.0
        %v1226 = vand.u32 %v772, 4294901760
        %1227 = vmatmul.mubr.f32.gmra.mxu0 %v1226
        %v1228 = vpop.f32.mrf.mxu0
        %v1229 = vadd.f32 %v1134, %v1228
        %v1230 = vpop.f32.mrf.mxu0
        %1231 = vdwg.mxu0
        %1232 = vmatprep.subr.mxu0 0.0
        %1233 = vmatpush1.msra.mxu0 0.0
        %1234 = vmatprep.subr.mxu0 0.0
        %1235 = vmatpush1.msra.mxu0 0.0
        %1236 = vmatprep.subr.mxu0 0.0
        %1237 = vmatpush1.msra.mxu0 0.0
        %1238 = vmatprep.subr.mxu0 0.0
        %1239 = vmatpush1.msra.mxu0 0.0
        %1240 = vmatprep.subr.mxu0 0.0
        %1241 = vmatpush1.msra.mxu0 0.0
        %1242 = vmatprep.subr.mxu0 0.0
        %1243 = vmatpush1.msra.mxu0 0.0
        %1244 = vmatprep.subr.mxu0 0.0
        %1245 = vmatpush1.msra.mxu0 0.0
        %1246 = vmatprep.subr.mxu0 0.0
        %1247 = vmatpush1.msra.mxu0 0.0
        %1248 = vmatprep.subr.mxu0 0.0
        %v1249 = vand.u32 %v769, 4294901760
        %1250 = vmatpush1.msra.mxu0 %v1249
        %1251 = vmatprep.subr.mxu0 0.0
        %v1252 = vand.u32 %v768, 4294901760
        %1253 = vmatpush1.msra.mxu0 %v1252
        %1254 = vmatprep.subr.mxu0 0.0
        %v1255 = vand.u32 %v767, 4294901760
        %1256 = vmatpush1.msra.mxu0 %v1255
        %1257 = vmatprep.subr.mxu0 0.0
        %v1258 = vand.u32 %v766, 4294901760
        %1259 = vmatpush1.msra.mxu0 %v1258
        %1260 = vmatprep.subr.mxu0 0.0
        %v1261 = vand.u32 %v765, 4294901760
        %1262 = vmatpush1.msra.mxu0 %v1261
        %1263 = vmatprep.subr.mxu0 0.0
        %v1264 = vand.u32 %v764, 4294901760
        %1265 = vmatpush1.msra.mxu0 %v1264
        %1266 = vmatprep.subr.mxu0 0.0
        %v1267 = vand.u32 %v763, 4294901760
        %1268 = vmatpush1.msra.mxu0 %v1267
        %1269 = vmatprep.subr.mxu0 0.0
        %v1270 = vand.u32 %v762, 4294901760
        %1271 = vmatpush1.msra.mxu0 %v1270
        %1272 = vmatprep.subr.mxu0 0.0
        %1273 = vmatpush2.msra.mxu0 0.0
        %1274 = vmatprep.subr.mxu0 0.0
        %1275 = vmatpush2.msra.mxu0 0.0
        %1276 = vmatprep.subr.mxu0 0.0
        %1277 = vmatpush2.msra.mxu0 0.0
        %1278 = vmatprep.subr.mxu0 0.0
        %1279 = vmatpush2.msra.mxu0 0.0
        %1280 = vmatprep.subr.mxu0 0.0
        %1281 = vmatpush2.msra.mxu0 0.0
        %1282 = vmatprep.subr.mxu0 0.0
        %1283 = vmatpush2.msra.mxu0 0.0
        %1284 = vmatprep.subr.mxu0 0.0
        %1285 = vmatpush2.msra.mxu0 0.0
        %1286 = vmatprep.subr.mxu0 0.0
        %1287 = vmatpush2.msra.mxu0 0.0
        %1288 = vmatprep.subr.mxu0 0.0
        %1289 = vmatpush2.msra.mxu0 0.0
        %1290 = vmatprep.subr.mxu0 0.0
        %1291 = vmatpush2.msra.mxu0 0.0
        %1292 = vmatprep.subr.mxu0 0.0
        %1293 = vmatpush2.msra.mxu0 0.0
        %1294 = vmatprep.subr.mxu0 0.0
        %1295 = vmatpush2.msra.mxu0 0.0
        %1296 = vmatprep.subr.mxu0 0.0
        %1297 = vmatpush2.msra.mxu0 0.0
        %1298 = vmatprep.subr.mxu0 0.0
        %1299 = vmatpush2.msra.mxu0 0.0
        %1300 = vmatprep.subr.mxu0 0.0
        %1301 = vmatpush2.msra.mxu0 0.0
        %1302 = vmatprep.subr.mxu0 0.0
        %1303 = vmatpush2.msra.mxu0 0.0
        %1304 = vmatprep.mubr.f32.mxu0 0.0
        %v1305 = vand.u32 %v772, 4294901760
        %1306 = vmatmul.mubr.f32.gmra.mxu0 %v1305
        %v1307 = vpop.f32.mrf.mxu0
        %v1308 = vadd.f32 %v1229, %v1307
        %v1309 = vpop.f32.mrf.mxu0
        %1310 = vdwg.mxu0
        %v1311 = vld [vmem:[%s252] sm:$0xff]
        %1312 = vset.pattern.permute.xlu0 0
        %1313 = vperm.xlu0 %1312, %v1311
        %v1314 = vpop.permute.xlu0 %1313
        %vm1315 = vcmp.eq.s32.totalorder %v1314, %v255
        %v1316 = vsel %vm1315, 1, 0
        %v1317 = vcvt.s32.f32 %v1316
        %v1319 = vsel %vm770, %v1317, 0
        %1321 = vmatprep.subr.mxu0 0.0
        %1322 = vmatpush1.msra.mxu0 0.0
        %1323 = vmatprep.subr.mxu0 0.0
        %1324 = vmatpush1.msra.mxu0 0.0
        %1325 = vmatprep.subr.mxu0 0.0
        %1326 = vmatpush1.msra.mxu0 0.0
        %1327 = vmatprep.subr.mxu0 0.0
        %1328 = vmatpush1.msra.mxu0 0.0
        %1329 = vmatprep.subr.mxu0 0.0
        %1330 = vmatpush1.msra.mxu0 0.0
        %1331 = vmatprep.subr.mxu0 0.0
        %1332 = vmatpush1.msra.mxu0 0.0
        %1333 = vmatprep.subr.mxu0 0.0
        %1334 = vmatpush1.msra.mxu0 0.0
        %1335 = vmatprep.subr.mxu0 0.0
        %1336 = vmatpush1.msra.mxu0 0.0
        %1337 = vmatprep.subr.mxu0 0.0
        %v1338 = vand.u32 %v769, 4294901760
        %1339 = vmatpush1.msra.mxu0 %v1338
        %1340 = vmatprep.subr.mxu0 0.0
        %v1341 = vand.u32 %v768, 4294901760
        %1342 = vmatpush1.msra.mxu0 %v1341
        %1343 = vmatprep.subr.mxu0 0.0
        %v1344 = vand.u32 %v767, 4294901760
        %1345 = vmatpush1.msra.mxu0 %v1344
        %1346 = vmatprep.subr.mxu0 0.0
        %v1347 = vand.u32 %v766, 4294901760
        %1348 = vmatpush1.msra.mxu0 %v1347
        %1349 = vmatprep.subr.mxu0 0.0
        %v1350 = vand.u32 %v765, 4294901760
        %1351 = vmatpush1.msra.mxu0 %v1350
        %1352 = vmatprep.subr.mxu0 0.0
        %v1353 = vand.u32 %v764, 4294901760
        %1354 = vmatpush1.msra.mxu0 %v1353
        %1355 = vmatprep.subr.mxu0 0.0
        %v1356 = vand.u32 %v763, 4294901760
        %1357 = vmatpush1.msra.mxu0 %v1356
        %1358 = vmatprep.subr.mxu0 0.0
        %v1359 = vand.u32 %v762, 4294901760
        %1360 = vmatpush1.msra.mxu0 %v1359
        %1361 = vmatprep.subr.mxu0 0.0
        %1362 = vmatpush2.msra.mxu0 0.0
        %1363 = vmatprep.subr.mxu0 0.0
        %1364 = vmatpush2.msra.mxu0 0.0
        %1365 = vmatprep.subr.mxu0 0.0
        %1366 = vmatpush2.msra.mxu0 0.0
        %1367 = vmatprep.subr.mxu0 0.0
        %1368 = vmatpush2.msra.mxu0 0.0
        %1369 = vmatprep.subr.mxu0 0.0
        %1370 = vmatpush2.msra.mxu0 0.0
        %1371 = vmatprep.subr.mxu0 0.0
        %1372 = vmatpush2.msra.mxu0 0.0
        %1373 = vmatprep.subr.mxu0 0.0
        %1374 = vmatpush2.msra.mxu0 0.0
        %1375 = vmatprep.subr.mxu0 0.0
        %1376 = vmatpush2.msra.mxu0 0.0
        %1377 = vmatprep.subr.mxu0 0.0
        %1378 = vmatpush2.msra.mxu0 0.0
        %1379 = vmatprep.subr.mxu0 0.0
        %1380 = vmatpush2.msra.mxu0 0.0
        %1381 = vmatprep.subr.mxu0 0.0
        %1382 = vmatpush2.msra.mxu0 0.0
        %1383 = vmatprep.subr.mxu0 0.0
        %1384 = vmatpush2.msra.mxu0 0.0
        %1385 = vmatprep.subr.mxu0 0.0
        %1386 = vmatpush2.msra.mxu0 0.0
        %1387 = vmatprep.subr.mxu0 0.0
        %1388 = vmatpush2.msra.mxu0 0.0
        %1389 = vmatprep.subr.mxu0 0.0
        %1390 = vmatpush2.msra.mxu0 0.0
        %1391 = vmatprep.subr.mxu0 0.0
        %1392 = vmatpush2.msra.mxu0 0.0
        %1393 = vmatprep.mubr.f32.mxu0 0.0
        %v1394 = vand.u32 %v1319, 4294901760
        %v1395 = vsub.f32 %v1319, %v1394
        %v1396 = vand.u32 %v1395, 4294901760
        %v1397 = vsub.f32 %v1395, %v1396
        %v1398 = vand.u32 %v1397, 4294901760
        %1399 = vmatmul.mubr.f32.gmra.mxu0 %v1398
        %v1400 = vpop.f32.mrf.mxu0
        %v1401 = vadd.f32 0.0, %v1400
        %v1402 = vpop.f32.mrf.mxu0
        %1403 = vdwg.mxu0
        %1404 = vmatprep.subr.mxu0 0.0
        %1405 = vmatpush1.msra.mxu0 0.0
        %1406 = vmatprep.subr.mxu0 0.0
        %1407 = vmatpush1.msra.mxu0 0.0
        %1408 = vmatprep.subr.mxu0 0.0
        %1409 = vmatpush1.msra.mxu0 0.0
        %1410 = vmatprep.subr.mxu0 0.0
        %1411 = vmatpush1.msra.mxu0 0.0
        %1412 = vmatprep.subr.mxu0 0.0
        %1413 = vmatpush1.msra.mxu0 0.0
        %1414 = vmatprep.subr.mxu0 0.0
        %1415 = vmatpush1.msra.mxu0 0.0
        %1416 = vmatprep.subr.mxu0 0.0
        %1417 = vmatpush1.msra.mxu0 0.0
        %1418 = vmatprep.subr.mxu0 0.0
        %1419 = vmatpush1.msra.mxu0 0.0
        %1420 = vmatprep.subr.mxu0 0.0
        %v1421 = vand.u32 %v769, 4294901760
        %v1422 = vsub.f32 %v769, %v1421
        %v1423 = vand.u32 %v1422, 4294901760
        %v1424 = vsub.f32 %v1422, %v1423
        %v1425 = vand.u32 %v1424, 4294901760
        %1426 = vmatpush1.msra.mxu0 %v1425
        %1427 = vmatprep.subr.mxu0 0.0
        %v1428 = vand.u32 %v768, 4294901760
        %v1429 = vsub.f32 %v768, %v1428
        %v1430 = vand.u32 %v1429, 4294901760
        %v1431 = vsub.f32 %v1429, %v1430
        %v1432 = vand.u32 %v1431, 4294901760
        %1433 = vmatpush1.msra.mxu0 %v1432
        %1434 = vmatprep.subr.mxu0 0.0
        %v1435 = vand.u32 %v767, 4294901760
        %v1436 = vsub.f32 %v767, %v1435
        %v1437 = vand.u32 %v1436, 4294901760
        %v1438 = vsub.f32 %v1436, %v1437
        %v1439 = vand.u32 %v1438, 4294901760
        %1440 = vmatpush1.msra.mxu0 %v1439
        %1441 = vmatprep.subr.mxu0 0.0
        %v1442 = vand.u32 %v766, 4294901760
        %v1443 = vsub.f32 %v766, %v1442
        %v1444 = vand.u32 %v1443, 4294901760
        %v1445 = vsub.f32 %v1443, %v1444
        %v1446 = vand.u32 %v1445, 4294901760
        %1447 = vmatpush1.msra.mxu0 %v1446
        %1448 = vmatprep.subr.mxu0 0.0
        %v1449 = vand.u32 %v765, 4294901760
        %v1450 = vsub.f32 %v765, %v1449
        %v1451 = vand.u32 %v1450, 4294901760
        %v1452 = vsub.f32 %v1450, %v1451
        %v1453 = vand.u32 %v1452, 4294901760
        %1454 = vmatpush1.msra.mxu0 %v1453
        %1455 = vmatprep.subr.mxu0 0.0
        %v1456 = vand.u32 %v764, 4294901760
        %v1457 = vsub.f32 %v764, %v1456
        %v1458 = vand.u32 %v1457, 4294901760
        %v1459 = vsub.f32 %v1457, %v1458
        %v1460 = vand.u32 %v1459, 4294901760
        %1461 = vmatpush1.msra.mxu0 %v1460
        %1462 = vmatprep.subr.mxu0 0.0
        %v1463 = vand.u32 %v763, 4294901760
        %v1464 = vsub.f32 %v763, %v1463
        %v1465 = vand.u32 %v1464, 4294901760
        %v1466 = vsub.f32 %v1464, %v1465
        %v1467 = vand.u32 %v1466, 4294901760
        %1468 = vmatpush1.msra.mxu0 %v1467
        %1469 = vmatprep.subr.mxu0 0.0
        %v1470 = vand.u32 %v762, 4294901760
        %v1471 = vsub.f32 %v762, %v1470
        %v1472 = vand.u32 %v1471, 4294901760
        %v1473 = vsub.f32 %v1471, %v1472
        %v1474 = vand.u32 %v1473, 4294901760
        %1475 = vmatpush1.msra.mxu0 %v1474
        %1476 = vmatprep.subr.mxu0 0.0
        %1477 = vmatpush2.msra.mxu0 0.0
        %1478 = vmatprep.subr.mxu0 0.0
        %1479 = vmatpush2.msra.mxu0 0.0
        %1480 = vmatprep.subr.mxu0 0.0
        %1481 = vmatpush2.msra.mxu0 0.0
        %1482 = vmatprep.subr.mxu0 0.0
        %1483 = vmatpush2.msra.mxu0 0.0
        %1484 = vmatprep.subr.mxu0 0.0
        %1485 = vmatpush2.msra.mxu0 0.0
        %1486 = vmatprep.subr.mxu0 0.0
        %1487 = vmatpush2.msra.mxu0 0.0
        %1488 = vmatprep.subr.mxu0 0.0
        %1489 = vmatpush2.msra.mxu0 0.0
        %1490 = vmatprep.subr.mxu0 0.0
        %1491 = vmatpush2.msra.mxu0 0.0
        %1492 = vmatprep.subr.mxu0 0.0
        %1493 = vmatpush2.msra.mxu0 0.0
        %1494 = vmatprep.subr.mxu0 0.0
        %1495 = vmatpush2.msra.mxu0 0.0
        %1496 = vmatprep.subr.mxu0 0.0
        %1497 = vmatpush2.msra.mxu0 0.0
        %1498 = vmatprep.subr.mxu0 0.0
        %1499 = vmatpush2.msra.mxu0 0.0
        %1500 = vmatprep.subr.mxu0 0.0
        %1501 = vmatpush2.msra.mxu0 0.0
        %1502 = vmatprep.subr.mxu0 0.0
        %1503 = vmatpush2.msra.mxu0 0.0
        %1504 = vmatprep.subr.mxu0 0.0
        %1505 = vmatpush2.msra.mxu0 0.0
        %1506 = vmatprep.subr.mxu0 0.0
        %1507 = vmatpush2.msra.mxu0 0.0
        %1508 = vmatprep.mubr.f32.mxu0 0.0
        %v1509 = vand.u32 %v1319, 4294901760
        %1510 = vmatmul.mubr.f32.gmra.mxu0 %v1509
        %v1511 = vpop.f32.mrf.mxu0
        %v1512 = vadd.f32 %v1401, %v1511
        %v1513 = vpop.f32.mrf.mxu0
        %1514 = vdwg.mxu0
        %1515 = vmatprep.subr.mxu0 0.0
        %1516 = vmatpush1.msra.mxu0 0.0
        %1517 = vmatprep.subr.mxu0 0.0
        %1518 = vmatpush1.msra.mxu0 0.0
        %1519 = vmatprep.subr.mxu0 0.0
        %1520 = vmatpush1.msra.mxu0 0.0
        %1521 = vmatprep.subr.mxu0 0.0
        %1522 = vmatpush1.msra.mxu0 0.0
        %1523 = vmatprep.subr.mxu0 0.0
        %1524 = vmatpush1.msra.mxu0 0.0
        %1525 = vmatprep.subr.mxu0 0.0
        %1526 = vmatpush1.msra.mxu0 0.0
        %1527 = vmatprep.subr.mxu0 0.0
        %1528 = vmatpush1.msra.mxu0 0.0
        %1529 = vmatprep.subr.mxu0 0.0
        %1530 = vmatpush1.msra.mxu0 0.0
        %1531 = vmatprep.subr.mxu0 0.0
        %v1532 = vand.u32 %v769, 4294901760
        %v1533 = vsub.f32 %v769, %v1532
        %1534 = vmatpush1.msra.mxu0 %v1533
        %1535 = vmatprep.subr.mxu0 0.0
        %v1536 = vand.u32 %v768, 4294901760
        %v1537 = vsub.f32 %v768, %v1536
        %1538 = vmatpush1.msra.mxu0 %v1537
        %1539 = vmatprep.subr.mxu0 0.0
        %v1540 = vand.u32 %v767, 4294901760
        %v1541 = vsub.f32 %v767, %v1540
        %1542 = vmatpush1.msra.mxu0 %v1541
        %1543 = vmatprep.subr.mxu0 0.0
        %v1544 = vand.u32 %v766, 4294901760
        %v1545 = vsub.f32 %v766, %v1544
        %1546 = vmatpush1.msra.mxu0 %v1545
        %1547 = vmatprep.subr.mxu0 0.0
        %v1548 = vand.u32 %v765, 4294901760
        %v1549 = vsub.f32 %v765, %v1548
        %1550 = vmatpush1.msra.mxu0 %v1549
        %1551 = vmatprep.subr.mxu0 0.0
        %v1552 = vand.u32 %v764, 4294901760
        %v1553 = vsub.f32 %v764, %v1552
        %1554 = vmatpush1.msra.mxu0 %v1553
        %1555 = vmatprep.subr.mxu0 0.0
        %v1556 = vand.u32 %v763, 4294901760
        %v1557 = vsub.f32 %v763, %v1556
        %1558 = vmatpush1.msra.mxu0 %v1557
        %1559 = vmatprep.subr.mxu0 0.0
        %v1560 = vand.u32 %v762, 4294901760
        %v1561 = vsub.f32 %v762, %v1560
        %1562 = vmatpush1.msra.mxu0 %v1561
        %1563 = vmatprep.subr.mxu0 0.0
        %1564 = vmatpush2.msra.mxu0 0.0
        %1565 = vmatprep.subr.mxu0 0.0
        %1566 = vmatpush2.msra.mxu0 0.0
        %1567 = vmatprep.subr.mxu0 0.0
        %1568 = vmatpush2.msra.mxu0 0.0
        %1569 = vmatprep.subr.mxu0 0.0
        %1570 = vmatpush2.msra.mxu0 0.0
        %1571 = vmatprep.subr.mxu0 0.0
        %1572 = vmatpush2.msra.mxu0 0.0
        %1573 = vmatprep.subr.mxu0 0.0
        %1574 = vmatpush2.msra.mxu0 0.0
        %1575 = vmatprep.subr.mxu0 0.0
        %1576 = vmatpush2.msra.mxu0 0.0
        %1577 = vmatprep.subr.mxu0 0.0
        %1578 = vmatpush2.msra.mxu0 0.0
        %1579 = vmatprep.subr.mxu0 0.0
        %1580 = vmatpush2.msra.mxu0 0.0
        %1581 = vmatprep.subr.mxu0 0.0
        %1582 = vmatpush2.msra.mxu0 0.0
        %1583 = vmatprep.subr.mxu0 0.0
        %1584 = vmatpush2.msra.mxu0 0.0
        %1585 = vmatprep.subr.mxu0 0.0
        %1586 = vmatpush2.msra.mxu0 0.0
        %1587 = vmatprep.subr.mxu0 0.0
        %1588 = vmatpush2.msra.mxu0 0.0
        %1589 = vmatprep.subr.mxu0 0.0
        %1590 = vmatpush2.msra.mxu0 0.0
        %1591 = vmatprep.subr.mxu0 0.0
        %1592 = vmatpush2.msra.mxu0 0.0
        %1593 = vmatprep.subr.mxu0 0.0
        %1594 = vmatpush2.msra.mxu0 0.0
        %1595 = vmatprep.mubr.f32.mxu0 0.0
        %v1596 = vand.u32 %v1319, 4294901760
        %v1597 = vsub.f32 %v1319, %v1596
        %1598 = vmatmul.mubr.f32.gmra.mxu0 %v1597
        %v1599 = vpop.f32.mrf.mxu0
        %v1600 = vadd.f32 %v1512, %v1599
        %v1601 = vpop.f32.mrf.mxu0
        %1602 = vdwg.mxu0
        %1603 = vmatprep.subr.mxu0 0.0
        %1604 = vmatpush1.msra.mxu0 0.0
        %1605 = vmatprep.subr.mxu0 0.0
        %1606 = vmatpush1.msra.mxu0 0.0
        %1607 = vmatprep.subr.mxu0 0.0
        %1608 = vmatpush1.msra.mxu0 0.0
        %1609 = vmatprep.subr.mxu0 0.0
        %1610 = vmatpush1.msra.mxu0 0.0
        %1611 = vmatprep.subr.mxu0 0.0
        %1612 = vmatpush1.msra.mxu0 0.0
        %1613 = vmatprep.subr.mxu0 0.0
        %1614 = vmatpush1.msra.mxu0 0.0
        %1615 = vmatprep.subr.mxu0 0.0
        %1616 = vmatpush1.msra.mxu0 0.0
        %1617 = vmatprep.subr.mxu0 0.0
        %1618 = vmatpush1.msra.mxu0 0.0
        %1619 = vmatprep.subr.mxu0 0.0
        %v1620 = vand.u32 %v769, 4294901760
        %1621 = vmatpush1.msra.mxu0 %v1620
        %1622 = vmatprep.subr.mxu0 0.0
        %v1623 = vand.u32 %v768, 4294901760
        %1624 = vmatpush1.msra.mxu0 %v1623
        %1625 = vmatprep.subr.mxu0 0.0
        %v1626 = vand.u32 %v767, 4294901760
        %1627 = vmatpush1.msra.mxu0 %v1626
        %1628 = vmatprep.subr.mxu0 0.0
        %v1629 = vand.u32 %v766, 4294901760
        %1630 = vmatpush1.msra.mxu0 %v1629
        %1631 = vmatprep.subr.mxu0 0.0
        %v1632 = vand.u32 %v765, 4294901760
        %1633 = vmatpush1.msra.mxu0 %v1632
        %1634 = vmatprep.subr.mxu0 0.0
        %v1635 = vand.u32 %v764, 4294901760
        %1636 = vmatpush1.msra.mxu0 %v1635
        %1637 = vmatprep.subr.mxu0 0.0
        %v1638 = vand.u32 %v763, 4294901760
        %1639 = vmatpush1.msra.mxu0 %v1638
        %1640 = vmatprep.subr.mxu0 0.0
        %v1641 = vand.u32 %v762, 4294901760
        %1642 = vmatpush1.msra.mxu0 %v1641
        %1643 = vmatprep.subr.mxu0 0.0
        %1644 = vmatpush2.msra.mxu0 0.0
        %1645 = vmatprep.subr.mxu0 0.0
        %1646 = vmatpush2.msra.mxu0 0.0
        %1647 = vmatprep.subr.mxu0 0.0
        %1648 = vmatpush2.msra.mxu0 0.0
        %1649 = vmatprep.subr.mxu0 0.0
        %1650 = vmatpush2.msra.mxu0 0.0
        %1651 = vmatprep.subr.mxu0 0.0
        %1652 = vmatpush2.msra.mxu0 0.0
        %1653 = vmatprep.subr.mxu0 0.0
        %1654 = vmatpush2.msra.mxu0 0.0
        %1655 = vmatprep.subr.mxu0 0.0
        %1656 = vmatpush2.msra.mxu0 0.0
        %1657 = vmatprep.subr.mxu0 0.0
        %1658 = vmatpush2.msra.mxu0 0.0
        %1659 = vmatprep.subr.mxu0 0.0
        %1660 = vmatpush2.msra.mxu0 0.0
        %1661 = vmatprep.subr.mxu0 0.0
        %1662 = vmatpush2.msra.mxu0 0.0
        %1663 = vmatprep.subr.mxu0 0.0
        %1664 = vmatpush2.msra.mxu0 0.0
        %1665 = vmatprep.subr.mxu0 0.0
        %1666 = vmatpush2.msra.mxu0 0.0
        %1667 = vmatprep.subr.mxu0 0.0
        %1668 = vmatpush2.msra.mxu0 0.0
        %1669 = vmatprep.subr.mxu0 0.0
        %1670 = vmatpush2.msra.mxu0 0.0
        %1671 = vmatprep.subr.mxu0 0.0
        %1672 = vmatpush2.msra.mxu0 0.0
        %1673 = vmatprep.subr.mxu0 0.0
        %1674 = vmatpush2.msra.mxu0 0.0
        %1675 = vmatprep.mubr.f32.mxu0 0.0
        %v1676 = vand.u32 %v1319, 4294901760
        %v1677 = vsub.f32 %v1319, %v1676
        %v1678 = vand.u32 %v1677, 4294901760
        %1679 = vmatmul.mubr.f32.gmra.mxu0 %v1678
        %v1680 = vpop.f32.mrf.mxu0
        %v1681 = vadd.f32 %v1600, %v1680
        %v1682 = vpop.f32.mrf.mxu0
        %1683 = vdwg.mxu0
        %1684 = vmatprep.subr.mxu0 0.0
        %1685 = vmatpush1.msra.mxu0 0.0
        %1686 = vmatprep.subr.mxu0 0.0
        %1687 = vmatpush1.msra.mxu0 0.0
        %1688 = vmatprep.subr.mxu0 0.0
        %1689 = vmatpush1.msra.mxu0 0.0
        %1690 = vmatprep.subr.mxu0 0.0
        %1691 = vmatpush1.msra.mxu0 0.0
        %1692 = vmatprep.subr.mxu0 0.0
        %1693 = vmatpush1.msra.mxu0 0.0
        %1694 = vmatprep.subr.mxu0 0.0
        %1695 = vmatpush1.msra.mxu0 0.0
        %1696 = vmatprep.subr.mxu0 0.0
        %1697 = vmatpush1.msra.mxu0 0.0
        %1698 = vmatprep.subr.mxu0 0.0
        %1699 = vmatpush1.msra.mxu0 0.0
        %1700 = vmatprep.subr.mxu0 0.0
        %v1701 = vand.u32 %v769, 4294901760
        %v1702 = vsub.f32 %v769, %v1701
        %v1703 = vand.u32 %v1702, 4294901760
        %1704 = vmatpush1.msra.mxu0 %v1703
        %1705 = vmatprep.subr.mxu0 0.0
        %v1706 = vand.u32 %v768, 4294901760
        %v1707 = vsub.f32 %v768, %v1706
        %v1708 = vand.u32 %v1707, 4294901760
        %1709 = vmatpush1.msra.mxu0 %v1708
        %1710 = vmatprep.subr.mxu0 0.0
        %v1711 = vand.u32 %v767, 4294901760
        %v1712 = vsub.f32 %v767, %v1711
        %v1713 = vand.u32 %v1712, 4294901760
        %1714 = vmatpush1.msra.mxu0 %v1713
        %1715 = vmatprep.subr.mxu0 0.0
        %v1716 = vand.u32 %v766, 4294901760
        %v1717 = vsub.f32 %v766, %v1716
        %v1718 = vand.u32 %v1717, 4294901760
        %1719 = vmatpush1.msra.mxu0 %v1718
        %1720 = vmatprep.subr.mxu0 0.0
        %v1721 = vand.u32 %v765, 4294901760
        %v1722 = vsub.f32 %v765, %v1721
        %v1723 = vand.u32 %v1722, 4294901760
        %1724 = vmatpush1.msra.mxu0 %v1723
        %1725 = vmatprep.subr.mxu0 0.0
        %v1726 = vand.u32 %v764, 4294901760
        %v1727 = vsub.f32 %v764, %v1726
        %v1728 = vand.u32 %v1727, 4294901760
        %1729 = vmatpush1.msra.mxu0 %v1728
        %1730 = vmatprep.subr.mxu0 0.0
        %v1731 = vand.u32 %v763, 4294901760
        %v1732 = vsub.f32 %v763, %v1731
        %v1733 = vand.u32 %v1732, 4294901760
        %1734 = vmatpush1.msra.mxu0 %v1733
        %1735 = vmatprep.subr.mxu0 0.0
        %v1736 = vand.u32 %v762, 4294901760
        %v1737 = vsub.f32 %v762, %v1736
        %v1738 = vand.u32 %v1737, 4294901760
        %1739 = vmatpush1.msra.mxu0 %v1738
        %1740 = vmatprep.subr.mxu0 0.0
        %1741 = vmatpush2.msra.mxu0 0.0
        %1742 = vmatprep.subr.mxu0 0.0
        %1743 = vmatpush2.msra.mxu0 0.0
        %1744 = vmatprep.subr.mxu0 0.0
        %1745 = vmatpush2.msra.mxu0 0.0
        %1746 = vmatprep.subr.mxu0 0.0
        %1747 = vmatpush2.msra.mxu0 0.0
        %1748 = vmatprep.subr.mxu0 0.0
        %1749 = vmatpush2.msra.mxu0 0.0
        %1750 = vmatprep.subr.mxu0 0.0
        %1751 = vmatpush2.msra.mxu0 0.0
        %1752 = vmatprep.subr.mxu0 0.0
        %1753 = vmatpush2.msra.mxu0 0.0
        %1754 = vmatprep.subr.mxu0 0.0
        %1755 = vmatpush2.msra.mxu0 0.0
        %1756 = vmatprep.subr.mxu0 0.0
        %1757 = vmatpush2.msra.mxu0 0.0
        %1758 = vmatprep.subr.mxu0 0.0
        %1759 = vmatpush2.msra.mxu0 0.0
        %1760 = vmatprep.subr.mxu0 0.0
        %1761 = vmatpush2.msra.mxu0 0.0
        %1762 = vmatprep.subr.mxu0 0.0
        %1763 = vmatpush2.msra.mxu0 0.0
        %1764 = vmatprep.subr.mxu0 0.0
        %1765 = vmatpush2.msra.mxu0 0.0
        %1766 = vmatprep.subr.mxu0 0.0
        %1767 = vmatpush2.msra.mxu0 0.0
        %1768 = vmatprep.subr.mxu0 0.0
        %1769 = vmatpush2.msra.mxu0 0.0
        %1770 = vmatprep.subr.mxu0 0.0
        %1771 = vmatpush2.msra.mxu0 0.0
        %1772 = vmatprep.mubr.f32.mxu0 0.0
        %v1773 = vand.u32 %v1319, 4294901760
        %1774 = vmatmul.mubr.f32.gmra.mxu0 %v1773
        %v1775 = vpop.f32.mrf.mxu0
        %v1776 = vadd.f32 %v1681, %v1775
        %v1777 = vpop.f32.mrf.mxu0
        %1778 = vdwg.mxu0
        %1779 = vmatprep.subr.mxu0 0.0
        %1780 = vmatpush1.msra.mxu0 0.0
        %1781 = vmatprep.subr.mxu0 0.0
        %1782 = vmatpush1.msra.mxu0 0.0
        %1783 = vmatprep.subr.mxu0 0.0
        %1784 = vmatpush1.msra.mxu0 0.0
        %1785 = vmatprep.subr.mxu0 0.0
        %1786 = vmatpush1.msra.mxu0 0.0
        %1787 = vmatprep.subr.mxu0 0.0
        %1788 = vmatpush1.msra.mxu0 0.0
        %1789 = vmatprep.subr.mxu0 0.0
        %1790 = vmatpush1.msra.mxu0 0.0
        %1791 = vmatprep.subr.mxu0 0.0
        %1792 = vmatpush1.msra.mxu0 0.0
        %1793 = vmatprep.subr.mxu0 0.0
        %1794 = vmatpush1.msra.mxu0 0.0
        %1795 = vmatprep.subr.mxu0 0.0
        %v1796 = vand.u32 %v769, 4294901760
        %1797 = vmatpush1.msra.mxu0 %v1796
        %1798 = vmatprep.subr.mxu0 0.0
        %v1799 = vand.u32 %v768, 4294901760
        %1800 = vmatpush1.msra.mxu0 %v1799
        %1801 = vmatprep.subr.mxu0 0.0
        %v1802 = vand.u32 %v767, 4294901760
        %1803 = vmatpush1.msra.mxu0 %v1802
        %1804 = vmatprep.subr.mxu0 0.0
        %v1805 = vand.u32 %v766, 4294901760
        %1806 = vmatpush1.msra.mxu0 %v1805
        %1807 = vmatprep.subr.mxu0 0.0
        %v1808 = vand.u32 %v765, 4294901760
        %1809 = vmatpush1.msra.mxu0 %v1808
        %1810 = vmatprep.subr.mxu0 0.0
        %v1811 = vand.u32 %v764, 4294901760
        %1812 = vmatpush1.msra.mxu0 %v1811
        %1813 = vmatprep.subr.mxu0 0.0
        %v1814 = vand.u32 %v763, 4294901760
        %1815 = vmatpush1.msra.mxu0 %v1814
        %1816 = vmatprep.subr.mxu0 0.0
        %v1817 = vand.u32 %v762, 4294901760
        %1818 = vmatpush1.msra.mxu0 %v1817
        %1819 = vmatprep.subr.mxu0 0.0
        %1820 = vmatpush2.msra.mxu0 0.0
        %1821 = vmatprep.subr.mxu0 0.0
        %1822 = vmatpush2.msra.mxu0 0.0
        %1823 = vmatprep.subr.mxu0 0.0
        %1824 = vmatpush2.msra.mxu0 0.0
        %1825 = vmatprep.subr.mxu0 0.0
        %1826 = vmatpush2.msra.mxu0 0.0
        %1827 = vmatprep.subr.mxu0 0.0
        %1828 = vmatpush2.msra.mxu0 0.0
        %1829 = vmatprep.subr.mxu0 0.0
        %1830 = vmatpush2.msra.mxu0 0.0
        %1831 = vmatprep.subr.mxu0 0.0
        %1832 = vmatpush2.msra.mxu0 0.0
        %1833 = vmatprep.subr.mxu0 0.0
        %1834 = vmatpush2.msra.mxu0 0.0
        %1835 = vmatprep.subr.mxu0 0.0
        %1836 = vmatpush2.msra.mxu0 0.0
        %1837 = vmatprep.subr.mxu0 0.0
        %1838 = vmatpush2.msra.mxu0 0.0
        %1839 = vmatprep.subr.mxu0 0.0
        %1840 = vmatpush2.msra.mxu0 0.0
        %1841 = vmatprep.subr.mxu0 0.0
        %1842 = vmatpush2.msra.mxu0 0.0
        %1843 = vmatprep.subr.mxu0 0.0
        %1844 = vmatpush2.msra.mxu0 0.0
        %1845 = vmatprep.subr.mxu0 0.0
        %1846 = vmatpush2.msra.mxu0 0.0
        %1847 = vmatprep.subr.mxu0 0.0
        %1848 = vmatpush2.msra.mxu0 0.0
        %1849 = vmatprep.subr.mxu0 0.0
        %1850 = vmatpush2.msra.mxu0 0.0
        %1851 = vmatprep.mubr.f32.mxu0 0.0
        %v1852 = vand.u32 %v1319, 4294901760
        %1853 = vmatmul.mubr.f32.gmra.mxu0 %v1852
        %v1854 = vpop.f32.mrf.mxu0
        %v1855 = vadd.f32 %v1776, %v1854
        %v1856 = vpop.f32.mrf.mxu0
        %1857 = vdwg.mxu0
        %v1858 = vmul.f32 %v752, %v1308
        %v1859 = vsel %vm266, %v1858, 0.0
        %1860 = vadd.xlane.f32.xlu0 %v1859
        %v1861 = vpop.xlane.xlu0 %1860
        %v1862 = vmul.f32 %v752, %v1855
        %v1863 = vsel %vm266, %v1862, 0.0
        %1864 = vadd.xlane.f32.xlu0 %v1863
        %v1865 = vpop.xlane.xlu0 %1864
        %v1866 = vsub.f32 0.0, %v1861
        %v1867 = vmax.f32 %v1866, 0.0
        %v1868 = vand.u32 2147483647, %v1866
        %v1869 = vsub.f32 0.0, %v1868
        %v1870 = vmul.f32 %v1869, 1.442695
        %v1871 = vpow.pop %v1870
        %v1872 = vadd.f32 %v1871, 1.0
        %v1873 = vlog2.pop %v1872
        %v1874 = vmul.f32 %v1873, 0.6931472
        %v1875 = vadd.f32 %v1867, %v1874
        %v1876 = vmax.f32 %v1865, 0.0
        %v1877 = vand.u32 2147483647, %v1865
        %v1878 = vsub.f32 0.0, %v1877
        %v1879 = vmul.f32 %v1878, 1.442695
        %v1880 = vpow.pop %v1879
        %v1881 = vadd.f32 %v1880, 1.0
        %v1882 = vlog2.pop %v1881
        %v1883 = vmul.f32 %v1882, 0.6931472
        %v1884 = vadd.f32 %v1876, %v1883
        %v1885 = vadd.f32 %v1875, %v1884
        %s1886 = smul.u32 %s19, 8
        %v1887 = vlaneseq
        %v1888 = vshrl.u32 %v1887, 7
        %v1889 = vstv %s1886
        %v1890 = vadd.s32 %v1889, %v1888
        %vm1891 = vcmp.lt.s32.totalorder %v1890, 16
        %v1892 = vsel %vm1891, %v1885, 0.0
        %vm1893 = vcmask 7168
        %v1894 = vsel %vm1893, %v1892, 0.0
        %1895 = vadd.xlane.f32.xlu0 %v1894
        %v1896 = vpop.xlane.xlu0 %1895
        %v1897 = vrot.slane %v1896, 4
        %v1898 = vadd.f32 %v1896, %v1897
        %v1899 = vrot.slane %v1898, 2
        %v1900 = vadd.f32 %v1898, %v1899
        %v1901 = vrot.slane %v1900, 1
        %v1902 = vadd.f32 %v1900, %v1901
        %s1903 = vtos %v1902
        %v1904 = vstv %s1903
        %1905 = vst [vmem:[%s240] sm:$0x1] %v1904
        %s1906 = sand.u32 %s147, 1
        %s1907 = scalar_lea.sflag [#allocation3], %s1906
        %s1908 = sand.u32 %s147, 1
        %s1909 = scalar_lea.vmem [#allocation2], %s1908
        // Predicated region
        $region41: #{tpu_custom_call.1} parent=39 // pred_check
          %p1910 = pneg %p157
        $region42: #{tpu_custom_call.1} parent=39 // pred_check_branch
          %1912 = sbr.rel (%p1910) target = $region44
        $region43: #{tpu_custom_call.1} parent=39 // pred_region
          %s1914 = ssub.s32 16, 16
          %1915 = vsyncadd %s1907, %s1914
          %s1916 = smul.addr %s19, 16
          %s1917 = scalar_lea.hbm %s5, %s1916
          %s1919 = sshll.u32 %s1909, 4
          %s1920 = int_to_ptr.vmem [resolvable:$true] %s1919
          %1922 = dma.vmem_to_hbm [thread:$0]  %s1920, 16, %s1917, %s1907
        $region44: #{tpu_custom_call.1} parent=39 // pred_fallthru
          _
      $region40: #{tpu_custom_call.1} parent=5 // pred_fallthru
        _
      %p1923 = scmp.le.s32.totalorder 2, %s14
      // Predicated region
      $region45: #{tpu_custom_call.1} parent=5 // pred_check
        %p1924 = pneg %p1923
      $region46: #{tpu_custom_call.1} parent=5 // pred_check_branch
        %1926 = sbr.rel (%p1924) target = $region48
      $region47: #{tpu_custom_call.1} parent=5 // pred_region
        %s1927 = ssub.s32 %s14, 2
        // Predicated region
        $region49: #{tpu_custom_call.1} parent=47 // pred_check
          %p1928 = pneg %p163
        $region50: #{tpu_custom_call.1} parent=47 // pred_check_branch
          %1930 = sbr.rel (%p1928) target = $region52
        $region51: #{tpu_custom_call.1} parent=47 // pred_region
          %s1931 = sand.u32 %s148, 1
          %s1932 = scalar_lea.sflag [#allocation3], %s1931
          %s1933 = sand.u32 %s148, 1
          %s1934 = scalar_lea.vmem [#allocation2], %s1933
          %1935 = dma.done %s1932, 16
        $region52: #{tpu_custom_call.1} parent=47 // pred_fallthru
          _
      $region48: #{tpu_custom_call.1} parent=5 // pred_fallthru
        _
    $region6: #{tpu_custom_call.1} parent=1 // loop_footer
      %s18 = sadd.s32 1, %s14
    $region7: #{tpu_custom_call.1} parent=1 // loop_footer_branch
      %13 = sbr.rel target = $region3
    $region8: #{tpu_custom_call.1} parent=1 // loop_exit
      _
    %1936 = vsyncpa [#allocation3], 1
    %s1937 = scalar_lea.sflag [#allocation3], 1
    %1938 = vsyncpa %s1937, 1

</llo_original>
